<compile_context>
chip_gen: v5e
topology: v5e:2x2
jax: 0.10.0
libtpu: 0.0.40
codegen_flags: <defaults>
</compile_context>

<pallas_src>
import math

import jax
import jax.numpy as jnp
from jax import lax
from jax.experimental import pallas as pl
from jax.experimental.pallas import tpu as pltpu

# -----------------------------------------------------------------------------
# Static configuration (small shapes consistent with Bottle2neck's forward).
# -----------------------------------------------------------------------------
B = 2                  # batch
T = 256                # sequence length (multi-tile so the grid is exercised)
T_TILE = 128           # lane-dense time tile (use 512-2048 at wav2vec2 scale)
INPLANES = 16
PLANES = 16            # == INPLANES (required by the residual add)
SCALE = 4
WIDTH = int(math.floor(PLANES / SCALE))     # 4
NUMS = SCALE - 1                            # 3
KSIZE = 3
DILATION = 2
NUM_PAD = (KSIZE // 2) * DILATION           # 2
HALO = NUMS * NUM_PAD                       # 6: total temporal receptive field
SE_RATIO = 8
SE_HID = PLANES // SE_RATIO                 # 2
WS = WIDTH * SCALE                          # 16
BN_EPS = 1e-5

SLAB_WIDTH = 128                            # lane-padded weight slab width
RHS_ROWS = KSIZE * WS + KSIZE * NUMS * WIDTH          # 84
RHS_ROWS_PAD = ((RHS_ROWS + 7) // 8) * 8               # 88


# -----------------------------------------------------------------------------
# Shared per-tile forward body (closure over static tiling / slab offsets).
# -----------------------------------------------------------------------------
def _make_tile_forward(offs, seq_len, t_tile, t_ext):
    def wblk(w_ref, name):
        r, h, c = offs[name]          # static python ints
        return w_ref[r:r + h, 0:c]

    def mm(a, b):
        return jnp.dot(a, b, preferred_element_type=jnp.float32)

    def tile_forward(x_ref, w_ref, rhs_ref):
        j = pl.program_id(1)
        x = x_ref[...]                                   # (INPLANES, t_ext)

        # Sequence-edge validity mask over global time positions (lane mask):
        # reproduces the dilated convs' zero padding at the true sequence ends.
        g0 = j * t_tile - HALO
        gpos = g0 + lax.broadcasted_iota(jnp.int32, (1, t_ext), 1)
        valid = jnp.logical_and(gpos >= 0, gpos < seq_len)

        # ---- conv1 (1x1) -> ReLU -> bn1 (folded) ----------------------------
        c1v = wblk(w_ref, "c1v")
        out1 = mm(wblk(w_ref, "c1w"), x)
        out1 = jnp.maximum(out1 + c1v[:, 0:1], 0.0)
        out1 = out1 * c1v[:, 1:2] + c1v[:, 2:3]
        out1 = jnp.where(valid, out1, 0.0)               # (WS, t_ext)

        def write_taps(a, row0):
            """Write the KSIZE dilated lane-shifts of `a` (tap-major) into the
            RHS scratch rows [row0, row0 + KSIZE*rows(a))."""
            c = a.shape[0]
            z = jnp.zeros((c, NUM_PAD), jnp.float32)
            ap = jnp.concatenate([z, a, z], axis=1)      # (c, t_ext + 2*NUM_PAD)
            for k in range(KSIZE):
                rhs_ref[row0 + k * c: row0 + (k + 1) * c, :] = (
                    ap[:, k * DILATION: k * DILATION + t_ext])

        # Hoisted once: taps of bn1's output, reused by every iteration.
        write_taps(out1, 0)                              # rows [0, 3*WS)

        # conv3 accumulation; c3last injects the untouched spx[NUMS] block.
        acc3 = mm(wblk(w_ref, "c3last"), out1)           # (PLANES, t_ext)

        post = None                                      # carried post-BN stack
        for i in range(NUMS):
            rows_i = KSIZE * WS
            if i > 0:
                # Carried-stack taps for this iteration (overwrites prev rows).
                write_taps(post, KSIZE * WS)
                rows_i += KSIZE * (i + 1) * WIDTH
            # One fused matmul per iteration: [Q_i | block-diag P_i] @ RHS.
            pre = mm(wblk(w_ref, f"w{i}"), rhs_ref[0:rows_i, :])  # ((i+2)*W, t_ext)
            v = wblk(w_ref, f"v{i}")
            pre = jnp.maximum(pre + v[:, 0:1], 0.0)      # conv bias + ReLU
            post = pre * v[:, 1:2] + v[:, 2:3]           # folded bns[i]
            post = jnp.where(valid, post, 0.0)           # sequence-edge zeros
            # weighted_sum[i] + conv3 row-block folded into R_i.
            acc3 = acc3 + mm(wblk(w_ref, f"r{i}"), post)

        # ---- conv3 bias -> ReLU -> bn3 (folded), central region only --------
        acc3 = acc3[:, HALO:HALO + t_tile]
        c3v = wblk(w_ref, "c3v")
        out3 = jnp.maximum(acc3 + c3v[:, 0:1], 0.0)
        out3 = out3 * c3v[:, 1:2] + c3v[:, 2:3]          # (PLANES, t_tile)

        x_cen = x[:, HALO:HALO + t_tile]                 # residual (INPLANES==PLANES)
        return out3, x_cen

    return tile_forward


# -----------------------------------------------------------------------------
# Wrapper: two grid sweeps (SE pooling pass, then gate+residual pass).
# -----------------------------------------------------------------------------
def bottle2neck_forward(x, kp, t_tile=T_TILE):
    """x: (B, C, T) float32, PyTorch NCW layout (returned in the same layout)."""
    Bq, Cin, seq_len = x.shape
    assert Cin == INPLANES == PLANES

    if (seq_len % t_tile != 0) or (t_tile % 128 != 0 and t_tile != seq_len):
        t_tile = seq_len      # TODO(synk): ragged / unaligned last-tile handling
    nt = seq_len // t_tile
    t_ext = t_tile + 2 * HALO

    slab, offs = kp["slab"], kp["offs"]
    slab_rows, slab_cols = slab.shape

    # Overlapping haloed tiles of x (zero-padded at the true sequence edges).
    xp = jnp.pad(x, ((0, 0), (0, 0), (HALO, HALO)))
    x_tiles = jnp.stack(
        [lax.dynamic_slice_in_dim(xp, j * t_tile, t_ext, axis=2) for j in range(nt)],
        axis=0)                                          # (nt, B, Cin, t_ext)

    x_spec = pl.BlockSpec((None, None, INPLANES, t_ext), lambda b, j: (j, b, 0, 0))
    # Constant index_map -> the weight slab is DMA'd once and stays VMEM-resident.
    w_spec = pl.BlockSpec((slab_rows, slab_cols), lambda b, j: (0, 0))
    scratch = [pltpu.VMEM((RHS_ROWS_PAD, t_ext), jnp.float32)]

    tile_forward = _make_tile_forward(offs, seq_len, t_tile, t_ext)

    # ---- sweep 1: accumulate per-(batch, channel) sums of out3 over T -------
    def pool_kernel(x_ref, w_ref, psum_ref, rhs_ref):
        out3, _ = tile_forward(x_ref, w_ref, rhs_ref)

        @pl.when(pl.program_id(1) == 0)
        def _init():
            psum_ref[...] = jnp.zeros_like(psum_ref)

        psum_ref[...] += jnp.sum(out3, axis=1, keepdims=True)

    pooled = pl.pallas_call(
        pool_kernel,
        out_shape=jax.ShapeDtypeStruct((Bq, PLANES, 1), jnp.float32),
        grid=(Bq, nt),
        in_specs=[x_spec, w_spec],
        out_specs=pl.BlockSpec((None, PLANES, 1), lambda b, j: (b, 0, 0)),
        scratch_shapes=scratch,
        compiler_params=pltpu.CompilerParams(
            dimension_semantics=("parallel", "arbitrary")),
    )(x_tiles, slab)

    # SE squeeze MLP: two (B,16)x(16,2)-sized matmuls + sigmoid — negligible
    # work, done as plain-JAX glue between the two sweeps.
    mean = pooled[:, :, 0] / float(seq_len)              # (B, PLANES)
    h = jnp.maximum(mean @ kp["se_w1"].T + kp["se_b1"], 0.0)
    gate = jax.nn.sigmoid(h @ kp["se_w2"].T + kp["se_b2"])
    gate = gate[:, :, None]                              # (B, PLANES, 1)

    # ---- sweep 2: recompute out3 per tile, apply gate + residual ------------
    def apply_kernel(x_ref, w_ref, g_ref, out_ref, rhs_ref):
        out3, x_cen = tile_forward(x_ref, w_ref, rhs_ref)
        out_ref[...] = out3 * g_ref[...] + x_cen

    out = pl.pallas_call(
        apply_kernel,
        out_shape=jax.ShapeDtypeStruct((Bq, PLANES, seq_len), jnp.float32),
        grid=(Bq, nt),
        in_specs=[x_spec, w_spec,
                  pl.BlockSpec((None, PLANES, 1), lambda b, j: (b, 0, 0))],
        out_specs=pl.BlockSpec((None, PLANES, t_tile), lambda b, j: (b, 0, j)),
        scratch_shapes=scratch,
        compiler_params=pltpu.CompilerParams(
            dimension_semantics=("parallel", "parallel")),
    )(x_tiles, slab, gate)

    return out                                           # (B, PLANES, T) NCW


# -----------------------------------------------------------------------------
# Deterministic parameter construction (PyTorch-shaped) + kernel packing
# -----------------------------------------------------------------------------
def make_params(key):
    keys = jax.random.split(key, 40)
    it = iter(keys)

    def nrm(shape, scl=0.1):
        return jax.random.normal(next(it), shape, jnp.float32) * scl

    def uni(shape):
        return jax.random.uniform(next(it), shape, jnp.float32, 0.5, 1.5)

    p = {}
    p["c1w"] = nrm((WS, INPLANES))                 # Conv1d weight (O, I, 1) squeezed
    p["c1b"] = nrm((WS,))
    p["bn1_g"] = 1.0 + nrm((WS,));  p["bn1_b"] = nrm((WS,))
    p["bn1_m"] = nrm((WS,));        p["bn1_v"] = uni((WS,))

    p["convs_w"] = nrm((NUMS, WIDTH, WIDTH, KSIZE))  # Conv2d (O, I, k, 1) squeezed
    p["convs_b"] = nrm((NUMS, WIDTH))
    p["bns_g"] = 1.0 + nrm((NUMS, WIDTH));  p["bns_b"] = nrm((NUMS, WIDTH))
    p["bns_m"] = nrm((NUMS, WIDTH));        p["bns_v"] = uni((NUMS, WIDTH))

    # weighted_sum[i]: module init is uniform 1/(i+2); perturb so the check is
    # sensitive to stack-slice ordering.
    ws = jnp.zeros((NUMS, SCALE), jnp.float32)
    for i in range(NUMS):
        base = jnp.full((i + 2,), 1.0 / (i + 2), jnp.float32)
        ws = ws.at[i, : i + 2].set(base + 0.05 * nrm((i + 2,), 1.0))
    p["ws"] = ws

    p["c3w"] = nrm((PLANES, WS));  p["c3b"] = nrm((PLANES,))
    p["bn3_g"] = 1.0 + nrm((PLANES,));  p["bn3_b"] = nrm((PLANES,))
    p["bn3_m"] = nrm((PLANES,));        p["bn3_v"] = uni((PLANES,))

    p["se_w1"] = nrm((SE_HID, PLANES));  p["se_b1"] = nrm((SE_HID,))
    p["se_w2"] = nrm((PLANES, SE_HID));  p["se_b2"] = nrm((PLANES,))
    return p


def pack_kernel_params(p):
    """Fold BN into scale/shift, pack the block-structured Res2Net weights in
    the weight-on-left / time-on-lanes convention, and lay everything out in a
    single 128-lane VMEM slab (static offsets returned alongside)."""
    def bnfold(g, b, m, v):
        s = g / jnp.sqrt(v + BN_EPS)
        return s, b - m * s

    bn1s, bn1h = bnfold(p["bn1_g"], p["bn1_b"], p["bn1_m"], p["bn1_v"])   # (WS,)
    bnss, bnsh = bnfold(p["bns_g"], p["bns_b"], p["bns_m"], p["bns_v"])   # (NUMS, W)
    bn3s, bn3h = bnfold(p["bn3_g"], p["bn3_b"], p["bn3_m"], p["bn3_v"])   # (P,)

    c3w = p["c3w"]                                       # (PLANES, WS)
    cw_kio = jnp.transpose(p["convs_w"], (0, 3, 2, 1))   # (NUMS, K, W_in, W_out)

    blocks = {
        "c1w": p["c1w"],                                              # (WS, Cin)
        "c1v": jnp.stack([p["c1b"], bn1s, bn1h], axis=1),             # (WS, 3)
        "c3v": jnp.stack([p["c3b"], bn3s, bn3h], axis=1),             # (PLANES, 3)
    }
    c3last = jnp.zeros((PLANES, WS), jnp.float32)
    c3last = c3last.at[:, NUMS * WIDTH:(NUMS + 1) * WIDTH].set(
        c3w[:, NUMS * WIDTH:(NUMS + 1) * WIDTH])
    blocks["c3last"] = c3last

    for i in range(NUMS):
        n = i + 2      # stack slices processed at iteration i

        # Q_i: taps(out1) (row index k*WS + c) -> output stack rows (s*W + w).
        Q = jnp.zeros((KSIZE * WS, n * WIDTH), jnp.float32)
        for k in range(KSIZE):
            # appended spx[i] feeds the LAST output slice (index n-1)
            Q = Q.at[k * WS + i * WIDTH: k * WS + (i + 1) * WIDTH,
                     (n - 1) * WIDTH: n * WIDTH].set(cw_kio[i, k])
            if i == 0:
                # at i=0 the carried slice is spx[NUMS] -> output slice 0
                Q = Q.at[k * WS + NUMS * WIDTH: k * WS + (NUMS + 1) * WIDTH,
                         0:WIDTH].set(cw_kio[i, k])
        wfused = Q.T                                                  # (n*W, 3*WS)

        if i >= 1:
            # Block-diagonal carried-stack weight, stacked across taps, padded
            # with zero rows for the appended slice; concatenated onto Q.
            m = i + 1
            Pc = jnp.concatenate(
                [jnp.kron(jnp.eye(m, dtype=jnp.float32), cw_kio[i, k])
                 for k in range(KSIZE)], axis=0)                      # (3mW, mW)
            Pc = jnp.pad(Pc, ((0, 0), (0, WIDTH)))                    # (3mW, nW)
            wfused = jnp.concatenate([wfused, Pc.T], axis=1)          # (nW, 3WS+3mW)
        blocks[f"w{i}"] = wfused

        blocks[f"v{i}"] = jnp.stack([jnp.tile(p["convs_b"][i], n),
                                     jnp.tile(bnss[i], n),
                                     jnp.tile(bnsh[i], n)], axis=1)   # (nW, 3)

        rows = c3w[:, i * WIDTH:(i + 1) * WIDTH]                      # (PLANES, W)
        blocks[f"r{i}"] = jnp.concatenate(
            [p["ws"][i, s] * rows for s in range(n)], axis=1)         # (PLANES, nW)

    names = ["c1w", "c1v", "c3last", "c3v"]
    for i in range(NUMS):
        names += [f"w{i}", f"v{i}", f"r{i}"]

    offs, parts, r = {}, [], 0
    for name in names:
        blk = blocks[name].astype(jnp.float32)
        h, w = blk.shape
        offs[name] = (r, h, w)
        parts.append(jnp.pad(blk, ((0, 0), (0, SLAB_WIDTH - w))))
        r += h
        gap = (-r) % 8                       # 8-sublane-align every block start
        if gap:
            parts.append(jnp.zeros((gap, SLAB_WIDTH), jnp.float32))
            r += gap
    slab = jnp.concatenate(parts, axis=0)    # (rows, 128) f32, ~100 KB

    return {"slab": slab, "offs": offs,
            "se_w1": p["se_w1"], "se_b1": p["se_b1"],
            "se_w2": p["se_w2"], "se_b2": p["se_b2"]}


# -----------------------------------------------------------------------------
# Pure-JAX reference (PyTorch NCW / NCHW semantics) for verification
# -----------------------------------------------------------------------------
def reference_forward(x_nct, p):
    def conv1x1(x, w, b):       # x: (B, C, T), w: (O, I)
        return jnp.einsum("oi,bit->bot", w, x) + b[None, :, None]

    def bn1d(x, g, bta, m, v):
        s = g / jnp.sqrt(v + BN_EPS)
        return x * s[None, :, None] + (bta - m * s)[None, :, None]

    out = conv1x1(x_nct, p["c1w"], p["c1b"])
    out = jnp.maximum(out, 0.0)
    out = bn1d(out, p["bn1_g"], p["bn1_b"], p["bn1_m"], p["bn1_v"])
    out = out[..., None]                               # (B, WS, T, 1)

    spx = [out[:, j * WIDTH:(j + 1) * WIDTH] for j in range(SCALE)]
    sp = spx[NUMS]
    acc = None
    for i in range(NUMS):
        sp = jnp.concatenate([sp, spx[i]], axis=-1)    # (B, W, T, i+2)
        w4 = p["convs_w"][i][..., None]                # (O, I, K, 1)
        conv = lax.conv_general_dilated(
            sp, w4, window_strides=(1, 1),
            padding=((NUM_PAD, NUM_PAD), (0, 0)),
            rhs_dilation=(DILATION, 1),
            dimension_numbers=("NCHW", "OIHW", "NCHW"))
        conv = conv + p["convs_b"][i][None, :, None, None]
        sp = jnp.maximum(conv, 0.0)
        s = p["bns_g"][i] / jnp.sqrt(p["bns_v"][i] + BN_EPS)
        h = p["bns_b"][i] - p["bns_m"][i] * s
        sp = sp * s[None, :, None, None] + h[None, :, None, None]
        sp_s = jnp.sum(sp * p["ws"][i, : i + 2][None, None, None, :], axis=-1)
        acc = sp_s if i == 0 else jnp.concatenate([acc, sp_s], axis=1)

    acc = jnp.concatenate([acc, spx[NUMS][..., 0]], axis=1)      # (B, WS, T)
    out = conv1x1(acc, p["c3w"], p["c3b"])
    out = jnp.maximum(out, 0.0)
    out = bn1d(out, p["bn3_g"], p["bn3_b"], p["bn3_m"], p["bn3_v"])

    pooled = jnp.mean(out, axis=2)                               # (B, P)
    hdn = jnp.maximum(pooled @ p["se_w1"].T + p["se_b1"], 0.0)
    gate = jax.nn.sigmoid(hdn @ p["se_w2"].T + p["se_b2"])
    out = out * gate[:, :, None]
    return out + x_nct


# -----------------------------------------------------------------------------
if __name__ == "__main__":
    key = jax.random.PRNGKey(0)
    kx, kparam = jax.random.split(key)

    x = jax.random.normal(kx, (B, INPLANES, T), jnp.float32)     # NCW like PyTorch
    params = make_params(kparam)
    kparams = pack_kernel_params(params)

    y = bottle2neck_forward(x, kparams, t_tile=T_TILE)
    y = jax.block_until_ready(y)

    y_ref = reference_forward(x, params)
    max_err = float(jnp.max(jnp.abs(y - y_ref)))
    assert max_err < 2e-3, f"mismatch vs reference: max abs err = {max_err}"

    print("KERNEL_OK")
</pallas_src>

<mosaic_0001>
module attributes {stable_mosaic.version = 11 : i64} {
  func.func @pool_kernel(%arg0: i32, %arg1: i32, %arg2: memref<1x1x16x140xf32, #tpu.memory_space<vmem>>, %arg3: memref<192x128xf32, #tpu.memory_space<vmem>>, %arg4: memref<1x16x1xf32, #tpu.memory_space<vmem>>, %arg5: memref<88x140xf32, #tpu.memory_space<vmem>>) attributes {dimension_semantics = [#tpu.dimension_semantics<parallel>, #tpu.dimension_semantics<arbitrary>], iteration_bounds = array<i64: 2, 2>, scalar_prefetch = 0 : i64, scratch_operands = 1 : i64, tpu.core_type = #tpu.core_type<tc>, window_params = [{transform_indices = @transform_0, window_bounds = array<i64: 1, 1, 16, 140>}, {pipeline_mode = #tpu.pipeline_mode<synchronous>, transform_indices = @transform_1, window_bounds = array<i64: 192, 128>}, {transform_indices = @transform_2, window_bounds = array<i64: 1, 16, 1>}]} {
    %c0 = arith.constant 0 : index
    %c0_0 = arith.constant 0 : index
    %c0_1 = arith.constant 0 : index
    %c0_2 = arith.constant 0 : index
    %0 = vector.load %arg2[%c0, %c0_0, %c0_1, %c0_2] : memref<1x1x16x140xf32, #tpu.memory_space<vmem>>, vector<1x1x16x140xf32>
    %1 = vector.shape_cast %0 : vector<1x1x16x140xf32> to vector<16x140xf32>
    %c128_i32 = arith.constant 128 : i32
    %2 = arith.muli %arg1, %c128_i32 : i32
    %c6_i32 = arith.constant 6 : i32
    %3 = arith.subi %2, %c6_i32 : i32
    %4 = tpu.iota {dimensions = array<i32: 1>} : vector<1x140xi32>
    %5 = vector.broadcast %3 : i32 to vector<1x140xi32>
    %6 = arith.addi %5, %4 : vector<1x140xi32>
    %c0_i32 = arith.constant 0 : i32
    %7 = vector.broadcast %c0_i32 : i32 to vector<1x140xi32>
    %8 = arith.cmpi sge, %6, %7 : vector<1x140xi32>
    %c256_i32 = arith.constant 256 : i32
    %9 = vector.broadcast %c256_i32 : i32 to vector<1x140xi32>
    %10 = arith.cmpi slt, %6, %9 : vector<1x140xi32>
    %11 = arith.andi %8, %10 : vector<1x140xi1>
    %c16 = arith.constant 16 : index
    %c0_3 = arith.constant 0 : index
    %12 = vector.load %arg3[%c16, %c0_3] : memref<192x128xf32, #tpu.memory_space<vmem>>, vector<16x3xf32>
    %c0_4 = arith.constant 0 : index
    %c0_5 = arith.constant 0 : index
    %13 = vector.load %arg3[%c0_4, %c0_5] : memref<192x128xf32, #tpu.memory_space<vmem>>, vector<16x16xf32>
    %cst = arith.constant dense<0.000000e+00> : vector<16x140xf32>
    %14 = tpu.matmul %13, %1, %cst {dimension_numbers = #tpu.dot_dimension_numbers<[1], [0], [0], [1], [0, 0, 1, 1], [], []>} : vector<16x16xf32>, vector<16x140xf32>, vector<16x140xf32> -> vector<16x140xf32>
    %15 = vector.extract_strided_slice %12 {offsets = [0, 0], sizes = [16, 1], strides = [1, 1]} : vector<16x3xf32> to vector<16x1xf32>
    %16 = vector.broadcast %15 : vector<16x1xf32> to vector<16x140xf32>
    %17 = arith.addf %14, %16 : vector<16x140xf32>
    %cst_6 = arith.constant 0.000000e+00 : f32
    %18 = vector.broadcast %cst_6 : f32 to vector<16x140xf32>
    %19 = arith.maximumf %17, %18 : vector<16x140xf32>
    %20 = vector.extract_strided_slice %12 {offsets = [0, 1], sizes = [16, 1], strides = [1, 1]} : vector<16x3xf32> to vector<16x1xf32>
    %21 = vector.broadcast %20 : vector<16x1xf32> to vector<16x140xf32>
    %22 = arith.mulf %19, %21 : vector<16x140xf32>
    %23 = vector.extract_strided_slice %12 {offsets = [0, 2], sizes = [16, 1], strides = [1, 1]} : vector<16x3xf32> to vector<16x1xf32>
    %24 = vector.broadcast %23 : vector<16x1xf32> to vector<16x140xf32>
    %25 = arith.addf %22, %24 : vector<16x140xf32>
    %cst_7 = arith.constant 0.000000e+00 : f32
    %26 = vector.shape_cast %11 : vector<1x140xi1> to vector<1x140xi1>
    %27 = vector.broadcast %26 : vector<1x140xi1> to vector<16x140xi1>
    %28 = vector.broadcast %cst_7 : f32 to vector<16x140xf32>
    %29 = arith.select %27, %25, %28 : vector<16x140xi1>, vector<16x140xf32>
    %cst_8 = arith.constant 0.000000e+00 : f32
    %30 = vector.broadcast %cst_8 : f32 to vector<16x2xf32>
    %31 = tpu.concatenate %30, %29, %30 in 1 : vector<16x2xf32>, vector<16x140xf32>, vector<16x2xf32> -> vector<16x144xf32>
    %32 = vector.extract_strided_slice %31 {offsets = [0, 0], sizes = [16, 140], strides = [1, 1]} : vector<16x144xf32> to vector<16x140xf32>
    %c0_9 = arith.constant 0 : index
    %c0_10 = arith.constant 0 : index
    %33 = vector.load %arg5[%c0_9, %c0_10] : memref<88x140xf32, #tpu.memory_space<vmem>>, vector<16x140xf32>
    tpu.vector_store %arg5[%c0_9, %c0_10], %32 {strides = array<i32>} : memref<88x140xf32, #tpu.memory_space<vmem>>, vector<16x140xf32>,
    %34 = vector.extract_strided_slice %31 {offsets = [0, 2], sizes = [16, 140], strides = [1, 1]} : vector<16x144xf32> to vector<16x140xf32>
    %c16_11 = arith.constant 16 : index
    %c0_12 = arith.constant 0 : index
    %35 = vector.load %arg5[%c16_11, %c0_12] : memref<88x140xf32, #tpu.memory_space<vmem>>, vector<16x140xf32>
    tpu.vector_store %arg5[%c16_11, %c0_12], %34 {strides = array<i32>} : memref<88x140xf32, #tpu.memory_space<vmem>>, vector<16x140xf32>,
    %36 = vector.extract_strided_slice %31 {offsets = [0, 4], sizes = [16, 140], strides = [1, 1]} : vector<16x144xf32> to vector<16x140xf32>
    %c32 = arith.constant 32 : index
    %c0_13 = arith.constant 0 : index
    %37 = vector.load %arg5[%c32, %c0_13] : memref<88x140xf32, #tpu.memory_space<vmem>>, vector<16x140xf32>
    tpu.vector_store %arg5[%c32, %c0_13], %36 {strides = array<i32>} : memref<88x140xf32, #tpu.memory_space<vmem>>, vector<16x140xf32>,
    %c32_14 = arith.constant 32 : index
    %c0_15 = arith.constant 0 : index
    %38 = vector.load %arg3[%c32_14, %c0_15] : memref<192x128xf32, #tpu.memory_space<vmem>>, vector<16x16xf32>
    %cst_16 = arith.constant dense<0.000000e+00> : vector<16x140xf32>
    %39 = tpu.matmul %38, %29, %cst_16 {dimension_numbers = #tpu.dot_dimension_numbers<[1], [0], [0], [1], [0, 0, 1, 1], [], []>} : vector<16x16xf32>, vector<16x140xf32>, vector<16x140xf32> -> vector<16x140xf32>
    %c64 = arith.constant 64 : index
    %c0_17 = arith.constant 0 : index
    %40 = vector.load %arg3[%c64, %c0_17] : memref<192x128xf32, #tpu.memory_space<vmem>>, vector<8x48xf32>
    %c0_18 = arith.constant 0 : index
    %c0_19 = arith.constant 0 : index
    %41 = vector.load %arg5[%c0_18, %c0_19] : memref<88x140xf32, #tpu.memory_space<vmem>>, vector<48x140xf32>
    %cst_20 = arith.constant dense<0.000000e+00> : vector<8x140xf32>
    %42 = tpu.matmul %40, %41, %cst_20 {dimension_numbers = #tpu.dot_dimension_numbers<[1], [0], [0], [1], [0, 0, 1, 1], [], []>} : vector<8x48xf32>, vector<48x140xf32>, vector<8x140xf32> -> vector<8x140xf32>
    %c72 = arith.constant 72 : index
    %c0_21 = arith.constant 0 : index
    %43 = vector.load %arg3[%c72, %c0_21] : memref<192x128xf32, #tpu.memory_space<vmem>>, vector<8x3xf32>
    %44 = vector.extract_strided_slice %43 {offsets = [0, 0], sizes = [8, 1], strides = [1, 1]} : vector<8x3xf32> to vector<8x1xf32>
    %45 = vector.broadcast %44 : vector<8x1xf32> to vector<8x140xf32>
    %46 = arith.addf %42, %45 : vector<8x140xf32>
    %cst_22 = arith.constant 0.000000e+00 : f32
    %47 = vector.broadcast %cst_22 : f32 to vector<8x140xf32>
    %48 = arith.maximumf %46, %47 : vector<8x140xf32>
    %49 = vector.extract_strided_slice %43 {offsets = [0, 1], sizes = [8, 1], strides = [1, 1]} : vector<8x3xf32> to vector<8x1xf32>
    %50 = vector.broadcast %49 : vector<8x1xf32> to vector<8x140xf32>
    %51 = arith.mulf %48, %50 : vector<8x140xf32>
    %52 = vector.extract_strided_slice %43 {offsets = [0, 2], sizes = [8, 1], strides = [1, 1]} : vector<8x3xf32> to vector<8x1xf32>
    %53 = vector.broadcast %52 : vector<8x1xf32> to vector<8x140xf32>
    %54 = arith.addf %51, %53 : vector<8x140xf32>
    %cst_23 = arith.constant 0.000000e+00 : f32
    %55 = vector.shape_cast %11 : vector<1x140xi1> to vector<1x140xi1>
    %56 = vector.broadcast %55 : vector<1x140xi1> to vector<8x140xi1>
    %57 = vector.broadcast %cst_23 : f32 to vector<8x140xf32>
    %58 = arith.select %56, %54, %57 : vector<8x140xi1>, vector<8x140xf32>
    %c80 = arith.constant 80 : index
    %c0_24 = arith.constant 0 : index
    %59 = vector.load %arg3[%c80, %c0_24] : memref<192x128xf32, #tpu.memory_space<vmem>>, vector<16x8xf32>
    %cst_25 = arith.constant dense<0.000000e+00> : vector<16x140xf32>
    %60 = tpu.matmul %59, %58, %cst_25 {dimension_numbers = #tpu.dot_dimension_numbers<[1], [0], [0], [1], [0, 0, 1, 1], [], []>} : vector<16x8xf32>, vector<8x140xf32>, vector<16x140xf32> -> vector<16x140xf32>
    %61 = arith.addf %39, %60 : vector<16x140xf32>
    %cst_26 = arith.constant 0.000000e+00 : f32
    %62 = vector.broadcast %cst_26 : f32 to vector<8x2xf32>
    %63 = tpu.concatenate %62, %58, %62 in 1 : vector<8x2xf32>, vector<8x140xf32>, vector<8x2xf32> -> vector<8x144xf32>
    %64 = vector.extract_strided_slice %63 {offsets = [0, 0], sizes = [8, 140], strides = [1, 1]} : vector<8x144xf32> to vector<8x140xf32>
    %c48 = arith.constant 48 : index
    %c0_27 = arith.constant 0 : index
    %65 = vector.load %arg5[%c48, %c0_27] : memref<88x140xf32, #tpu.memory_space<vmem>>, vector<8x140xf32>
    tpu.vector_store %arg5[%c48, %c0_27], %64 {strides = array<i32>} : memref<88x140xf32, #tpu.memory_space<vmem>>, vector<8x140xf32>,
    %66 = vector.extract_strided_slice %63 {offsets = [0, 2], sizes = [8, 140], strides = [1, 1]} : vector<8x144xf32> to vector<8x140xf32>
    %c56 = arith.constant 56 : index
    %c0_28 = arith.constant 0 : index
    %67 = vector.load %arg5[%c56, %c0_28] : memref<88x140xf32, #tpu.memory_space<vmem>>, vector<8x140xf32>
    tpu.vector_store %arg5[%c56, %c0_28], %66 {strides = array<i32>} : memref<88x140xf32, #tpu.memory_space<vmem>>, vector<8x140xf32>,
    %68 = vector.extract_strided_slice %63 {offsets = [0, 4], sizes = [8, 140], strides = [1, 1]} : vector<8x144xf32> to vector<8x140xf32>
    %c64_29 = arith.constant 64 : index
    %c0_30 = arith.constant 0 : index
    %69 = vector.load %arg5[%c64_29, %c0_30] : memref<88x140xf32, #tpu.memory_space<vmem>>, vector<8x140xf32>
    tpu.vector_store %arg5[%c64_29, %c0_30], %68 {strides = array<i32>} : memref<88x140xf32, #tpu.memory_space<vmem>>, vector<8x140xf32>,
    %c96 = arith.constant 96 : index
    %c0_31 = arith.constant 0 : index
    %70 = vector.load %arg3[%c96, %c0_31] : memref<192x128xf32, #tpu.memory_space<vmem>>, vector<12x72xf32>
    %c0_32 = arith.constant 0 : index
    %c0_33 = arith.constant 0 : index
    %71 = vector.load %arg5[%c0_32, %c0_33] : memref<88x140xf32, #tpu.memory_space<vmem>>, vector<72x140xf32>
    %cst_34 = arith.constant dense<0.000000e+00> : vector<12x140xf32>
    %72 = tpu.matmul %70, %71, %cst_34 {dimension_numbers = #tpu.dot_dimension_numbers<[1], [0], [0], [1], [0, 0, 1, 1], [], []>} : vector<12x72xf32>, vector<72x140xf32>, vector<12x140xf32> -> vector<12x140xf32>
    %c112 = arith.constant 112 : index
    %c0_35 = arith.constant 0 : index
    %73 = vector.load %arg3[%c112, %c0_35] : memref<192x128xf32, #tpu.memory_space<vmem>>, vector<12x3xf32>
    %74 = vector.extract_strided_slice %73 {offsets = [0, 0], sizes = [12, 1], strides = [1, 1]} : vector<12x3xf32> to vector<12x1xf32>
    %75 = vector.broadcast %74 : vector<12x1xf32> to vector<12x140xf32>
    %76 = arith.addf %72, %75 : vector<12x140xf32>
    %cst_36 = arith.constant 0.000000e+00 : f32
    %77 = vector.broadcast %cst_36 : f32 to vector<12x140xf32>
    %78 = arith.maximumf %76, %77 : vector<12x140xf32>
    %79 = vector.extract_strided_slice %73 {offsets = [0, 1], sizes = [12, 1], strides = [1, 1]} : vector<12x3xf32> to vector<12x1xf32>
    %80 = vector.broadcast %79 : vector<12x1xf32> to vector<12x140xf32>
    %81 = arith.mulf %78, %80 : vector<12x140xf32>
    %82 = vector.extract_strided_slice %73 {offsets = [0, 2], sizes = [12, 1], strides = [1, 1]} : vector<12x3xf32> to vector<12x1xf32>
    %83 = vector.broadcast %82 : vector<12x1xf32> to vector<12x140xf32>
    %84 = arith.addf %81, %83 : vector<12x140xf32>
    %cst_37 = arith.constant 0.000000e+00 : f32
    %85 = vector.shape_cast %11 : vector<1x140xi1> to vector<1x140xi1>
    %86 = vector.broadcast %85 : vector<1x140xi1> to vector<12x140xi1>
    %87 = vector.broadcast %cst_37 : f32 to vector<12x140xf32>
    %88 = arith.select %86, %84, %87 : vector<12x140xi1>, vector<12x140xf32>
    %c128 = arith.constant 128 : index
    %c0_38 = arith.constant 0 : index
    %89 = vector.load %arg3[%c128, %c0_38] : memref<192x128xf32, #tpu.memory_space<vmem>>, vector<16x12xf32>
    %cst_39 = arith.constant dense<0.000000e+00> : vector<16x140xf32>
    %90 = tpu.matmul %89, %88, %cst_39 {dimension_numbers = #tpu.dot_dimension_numbers<[1], [0], [0], [1], [0, 0, 1, 1], [], []>} : vector<16x12xf32>, vector<12x140xf32>, vector<16x140xf32> -> vector<16x140xf32>
    %91 = arith.addf %61, %90 : vector<16x140xf32>
    %cst_40 = arith.constant 0.000000e+00 : f32
    %92 = vector.broadcast %cst_40 : f32 to vector<12x2xf32>
    %93 = tpu.concatenate %92, %88, %92 in 1 : vector<12x2xf32>, vector<12x140xf32>, vector<12x2xf32> -> vector<12x144xf32>
    %94 = vector.extract_strided_slice %93 {offsets = [0, 0], sizes = [12, 140], strides = [1, 1]} : vector<12x144xf32> to vector<12x140xf32>
    %c48_41 = arith.constant 48 : index
    %c0_42 = arith.constant 0 : index
    %95 = vector.load %arg5[%c48_41, %c0_42] : memref<88x140xf32, #tpu.memory_space<vmem>>, vector<12x140xf32>
    tpu.vector_store %arg5[%c48_41, %c0_42], %94 {strides = array<i32>} : memref<88x140xf32, #tpu.memory_space<vmem>>, vector<12x140xf32>,
    %96 = vector.extract_strided_slice %93 {offsets = [0, 2], sizes = [12, 140], strides = [1, 1]} : vector<12x144xf32> to vector<12x140xf32>
    %c60 = arith.constant 60 : index
    %c0_43 = arith.constant 0 : index
    %97 = vector.load %arg5[%c60, %c0_43] : memref<88x140xf32, #tpu.memory_space<vmem>>, vector<12x140xf32>
    tpu.vector_store %arg5[%c60, %c0_43], %96 {strides = array<i32>} : memref<88x140xf32, #tpu.memory_space<vmem>>, vector<12x140xf32>,
    %98 = vector.extract_strided_slice %93 {offsets = [0, 4], sizes = [12, 140], strides = [1, 1]} : vector<12x144xf32> to vector<12x140xf32>
    %c72_44 = arith.constant 72 : index
    %c0_45 = arith.constant 0 : index
    %99 = vector.load %arg5[%c72_44, %c0_45] : memref<88x140xf32, #tpu.memory_space<vmem>>, vector<12x140xf32>
    tpu.vector_store %arg5[%c72_44, %c0_45], %98 {strides = array<i32>} : memref<88x140xf32, #tpu.memory_space<vmem>>, vector<12x140xf32>,
    %c144 = arith.constant 144 : index
    %c0_46 = arith.constant 0 : index
    %100 = vector.load %arg3[%c144, %c0_46] : memref<192x128xf32, #tpu.memory_space<vmem>>, vector<16x84xf32>
    %c0_47 = arith.constant 0 : index
    %c0_48 = arith.constant 0 : index
    %101 = vector.load %arg5[%c0_47, %c0_48] : memref<88x140xf32, #tpu.memory_space<vmem>>, vector<84x140xf32>
    %cst_49 = arith.constant dense<0.000000e+00> : vector<16x140xf32>
    %102 = tpu.matmul %100, %101, %cst_49 {dimension_numbers = #tpu.dot_dimension_numbers<[1], [0], [0], [1], [0, 0, 1, 1], [], []>} : vector<16x84xf32>, vector<84x140xf32>, vector<16x140xf32> -> vector<16x140xf32>
    %c160 = arith.constant 160 : index
    %c0_50 = arith.constant 0 : index
    %103 = vector.load %arg3[%c160, %c0_50] : memref<192x128xf32, #tpu.memory_space<vmem>>, vector<16x3xf32>
    %104 = vector.extract_strided_slice %103 {offsets = [0, 0], sizes = [16, 1], strides = [1, 1]} : vector<16x3xf32> to vector<16x1xf32>
    %105 = vector.broadcast %104 : vector<16x1xf32> to vector<16x140xf32>
    %106 = arith.addf %102, %105 : vector<16x140xf32>
    %cst_51 = arith.constant 0.000000e+00 : f32
    %107 = vector.broadcast %cst_51 : f32 to vector<16x140xf32>
    %108 = arith.maximumf %106, %107 : vector<16x140xf32>
    %109 = vector.extract_strided_slice %103 {offsets = [0, 1], sizes = [16, 1], strides = [1, 1]} : vector<16x3xf32> to vector<16x1xf32>
    %110 = vector.broadcast %109 : vector<16x1xf32> to vector<16x140xf32>
    %111 = arith.mulf %108, %110 : vector<16x140xf32>
    %112 = vector.extract_strided_slice %103 {offsets = [0, 2], sizes = [16, 1], strides = [1, 1]} : vector<16x3xf32> to vector<16x1xf32>
    %113 = vector.broadcast %112 : vector<16x1xf32> to vector<16x140xf32>
    %114 = arith.addf %111, %113 : vector<16x140xf32>
    %cst_52 = arith.constant 0.000000e+00 : f32
    %115 = vector.shape_cast %11 : vector<1x140xi1> to vector<1x140xi1>
    %116 = vector.broadcast %115 : vector<1x140xi1> to vector<16x140xi1>
    %117 = vector.broadcast %cst_52 : f32 to vector<16x140xf32>
    %118 = arith.select %116, %114, %117 : vector<16x140xi1>, vector<16x140xf32>
    %c176 = arith.constant 176 : index
    %c0_53 = arith.constant 0 : index
    %119 = vector.load %arg3[%c176, %c0_53] : memref<192x128xf32, #tpu.memory_space<vmem>>, vector<16x16xf32>
    %cst_54 = arith.constant dense<0.000000e+00> : vector<16x140xf32>
    %120 = tpu.matmul %119, %118, %cst_54 {dimension_numbers = #tpu.dot_dimension_numbers<[1], [0], [0], [1], [0, 0, 1, 1], [], []>} : vector<16x16xf32>, vector<16x140xf32>, vector<16x140xf32> -> vector<16x140xf32>
    %121 = arith.addf %91, %120 : vector<16x140xf32>
    %122 = vector.extract_strided_slice %121 {offsets = [0, 6], sizes = [16, 128], strides = [1, 1]} : vector<16x140xf32> to vector<16x128xf32>
    %c48_55 = arith.constant 48 : index
    %c0_56 = arith.constant 0 : index
    %123 = vector.load %arg3[%c48_55, %c0_56] : memref<192x128xf32, #tpu.memory_space<vmem>>, vector<16x3xf32>
    %124 = vector.extract_strided_slice %123 {offsets = [0, 0], sizes = [16, 1], strides = [1, 1]} : vector<16x3xf32> to vector<16x1xf32>
    %125 = vector.broadcast %124 : vector<16x1xf32> to vector<16x128xf32>
    %126 = arith.addf %122, %125 : vector<16x128xf32>
    %cst_57 = arith.constant 0.000000e+00 : f32
    %127 = vector.broadcast %cst_57 : f32 to vector<16x128xf32>
    %128 = arith.maximumf %126, %127 : vector<16x128xf32>
    %129 = vector.extract_strided_slice %123 {offsets = [0, 1], sizes = [16, 1], strides = [1, 1]} : vector<16x3xf32> to vector<16x1xf32>
    %130 = vector.broadcast %129 : vector<16x1xf32> to vector<16x128xf32>
    %131 = arith.mulf %128, %130 : vector<16x128xf32>
    %132 = vector.extract_strided_slice %123 {offsets = [0, 2], sizes = [16, 1], strides = [1, 1]} : vector<16x3xf32> to vector<16x1xf32>
    %133 = vector.broadcast %132 : vector<16x1xf32> to vector<16x128xf32>
    %134 = arith.addf %131, %133 : vector<16x128xf32>
    %c0_i32_58 = arith.constant 0 : i32
    %135 = arith.cmpi eq, %arg1, %c0_i32_58 : i32
    %136 = arith.extui %135 : i1 to i32
    %c0_i32_59 = arith.constant 0 : i32
    %137 = arith.cmpi ne, %136, %c0_i32_59 : i32
    scf.if %137 {
      %cst_67 = arith.constant 0.000000e+00 : f32
      %146 = vector.broadcast %cst_67 : f32 to vector<16x1xf32>
      %c0_68 = arith.constant 0 : index
      %c0_69 = arith.constant 0 : index
      %c0_70 = arith.constant 0 : index
      %147 = vector.load %arg4[%c0_68, %c0_69, %c0_70] : memref<1x16x1xf32, #tpu.memory_space<vmem>>, vector<1x16x1xf32>
      %148 = vector.shape_cast %147 : vector<1x16x1xf32> to vector<16x1xf32>
      %149 = vector.shape_cast %146 : vector<16x1xf32> to vector<1x16x1xf32>
      tpu.vector_store %arg4[%c0_68, %c0_69, %c0_70], %149 {strides = array<i32>} : memref<1x16x1xf32, #tpu.memory_space<vmem>>, vector<1x16x1xf32>,
    } else {
    }
    %c0_60 = arith.constant 0 : index
    %c0_61 = arith.constant 0 : index
    %c0_62 = arith.constant 0 : index
    %138 = vector.load %arg4[%c0_60, %c0_61, %c0_62] : memref<1x16x1xf32, #tpu.memory_space<vmem>>, vector<1x16x1xf32>
    %139 = vector.shape_cast %138 : vector<1x16x1xf32> to vector<16x1xf32>
    %cst_63 = arith.constant dense<0.000000e+00> : vector<16xf32>
    %140 = vector.multi_reduction <add>, %134, %cst_63 [1] : vector<16x128xf32> to vector<16xf32>
    %141 = vector.shape_cast %140 : vector<16xf32> to vector<16x1xf32>
    %142 = arith.addf %139, %141 : vector<16x1xf32>
    %c0_64 = arith.constant 0 : index
    %c0_65 = arith.constant 0 : index
    %c0_66 = arith.constant 0 : index
    %143 = vector.load %arg4[%c0_64, %c0_65, %c0_66] : memref<1x16x1xf32, #tpu.memory_space<vmem>>, vector<1x16x1xf32>
    %144 = vector.shape_cast %143 : vector<1x16x1xf32> to vector<16x1xf32>
    %145 = vector.shape_cast %142 : vector<16x1xf32> to vector<1x16x1xf32>
    tpu.vector_store %arg4[%c0_64, %c0_65, %c0_66], %145 {strides = array<i32>} : memref<1x16x1xf32, #tpu.memory_space<vmem>>, vector<1x16x1xf32>,
    return
  }
  func.func @transform_0(%arg0: i32, %arg1: i32) -> (i32, i32, i32, i32) {
    %c0_i32 = arith.constant 0 : i32
    %c0_i32_0 = arith.constant 0 : i32
    %c0_i32_1 = arith.constant 0 : i32
    return %arg1, %arg0, %c0_i32, %c0_i32_0 : i32, i32, i32, i32
  }
  func.func @transform_1(%arg0: i32, %arg1: i32) -> (i32, i32) {
    %c0_i32 = arith.constant 0 : i32
    %c0_i32_0 = arith.constant 0 : i32
    %c0_i32_1 = arith.constant 0 : i32
    return %c0_i32, %c0_i32_0 : i32, i32
  }
  func.func @transform_2(%arg0: i32, %arg1: i32) -> (i32, i32, i32) {
    %c0_i32 = arith.constant 0 : i32
    %c0_i32_0 = arith.constant 0 : i32
    %c0_i32_1 = arith.constant 0 : i32
    return %arg0, %c0_i32, %c0_i32_0 : i32, i32, i32
  }
}

</mosaic_0001>

<llo_original>
// kernel: tpu_custom_call.1
$region0: #{tpu_custom_call.1}
  #allocation0 [shape = 'u32[]', space=smem, size = 0x4, offset = 0x4, fixed_abs, tag = 'smem constant byte address 0x4 - core index']
  #allocation1 [shape = 'u32[72,128]{1,0:T(1,128)}', space=vmem, size = 0x9000, scoped, tag = 'internal scratch']
  #allocation2 [shape = 'f32[88,140]{1,0:T(8,128)}', space=vmem, size = 0x16000, scoped, tag = 'scratch operand']
  %s0 = inlined_call_operand.hbm [shape: f32[2,2,16,140], index: 0, kind: input, shape index: {}]
  %s1 = inlined_call_operand.hbm [shape: f32[192,128], index: 1, kind: input, shape index: {}]
  %s2 = inlined_call_operand.vmem [shape: f32[2,16,1], index: 2, kind: output, shape index: {}]
  %s3 = sld [smem:[#allocation0]]
  $region53: #{tpu_custom_call.1} parent=0
    _
  %s5 = ssub.s32 1, %s3
  %s6 = scalar_select 0, %s5, %s3
  $region1: #{tpu_custom_call.1} parent=0
    #allocation3 [shape = 'u8[32768]{0}', space=vmem, size = 0x8000, scoped, tag = 'input window, operand 0']
    #allocation4 [shape = 's32[2]{0}', space=sflag, size = 0x8, scoped, tag = 'scoped memory for tpu_custom_call.1']
    #allocation5 [shape = 'u8[98304]{0}', space=vmem, size = 0x18000, scoped, tag = 'input window, operand 1, single buffered']
    #allocation6 [shape = 's32[1]{0}', space=sflag, size = 0x4, scoped, tag = 'scoped memory for tpu_custom_call.1']
    %7 = vsyncpa [#allocation4], 0
    %s8 = scalar_lea.sflag [#allocation4], 1
    %9 = vsyncpa %s8, 0
    %10 = vsyncpa [#allocation6], 0
    loop: start=0, step=1, limit=6
    $region2: #{tpu_custom_call.1} parent=1 // loop_pre_header
      _
    $region3: #{tpu_custom_call.1} parent=1 // loop_header
      %s12 = sphi 0, %s16
      %p13 = scmp.ge.s32.totalorder %s12, 6
      %s19 = sphi 0, %s31
      %s20 = sphi 0, %s27
      %s21 = sphi 0, %s19
      %s22 = sphi 0, %s20
      %s23 = sphi 0, %s21
      %s24 = sphi 0, %s22
      %s36 = sphi 0, %s38
      %s39 = sphi 0, %s36
      %s40 = sphi 0, %s39
      %s56 = sphi 0, %s40
      %s60 = sphi 0, %s60
      %s62 = sphi 0, %s60
      %s63 = sphi 0, %s62
      %s77 = sphi 0, %s63
      %s83 = sphi 0, %s85
      %s86 = sphi 0, %s83
      %s87 = sphi 0, %s86
      %s103 = sphi 0, %s87
    $region4: #{tpu_custom_call.1} parent=1 // loop_header_branch
      %15 = sbr.rel (%p13) target = $region8
    $region5: #{tpu_custom_call.1} parent=1 // loop_body
      %s17 = ssub.s32 %s12, 1
      %s18 = ssub.s32 %s12, 2
      %s25 = sadd.s32 1, %s20
      %p26 = scmp.ge.s32.totalorder %s25, 2
      %s27 = scalar_select %p26, 0, %s25
      %s28 = sadd.s32 1, %s19
      %s29 = scalar_select %p26, %s28, %s19
      %p30 = scmp.ge.s32.totalorder %s29, 2
      %s31 = scalar_select %p30, 0, %s29
      %s32 = ssub.s32 %s20, %s27
      %s33 = ssub.s32 %s19, %s31
      %s34 = sor.u32 %s32, %s33
      %p35 = scmp.eq.s32.totalorder %s34, 0
      %s37 = sadd.s32 %s36, 1
      %s38 = scalar_select %p35, %s36, %s37
      %p41 = pneg %p35
      %p42 = scmp.eq.s32.totalorder %s12, 3
      %p43 = por %p41, %p42
      %p44 = scmp.ne.s32.totalorder %s36, %s39
      %p45 = scmp.eq.s32.totalorder %s12, 0
      %p46 = por %p44, %p45
      %p47 = scmp.ne.s32.totalorder %s36, %s39
      %p48 = scmp.eq.s32.totalorder %s17, 3
      %p49 = por %p47, %p48
      %p50 = scmp.ne.s32.totalorder %s39, %s40
      %p51 = scmp.eq.s32.totalorder %s17, 0
      %p52 = por %p50, %p51
      %p53 = scmp.ne.s32.totalorder %s39, %s40
      %p54 = scmp.eq.s32.totalorder %s18, 3
      %p55 = por %p53, %p54
      %p57 = scmp.ne.s32.totalorder %s40, %s56
      %p58 = scmp.eq.s32.totalorder %s18, 0
      %p59 = por %p57, %p58
      %s61 = sadd.s32 %s60, 1
      %p64 = scmp.eq.s32.totalorder %s12, 3
      %p65 = scmp.ne.s32.totalorder %s60, %s62
      %p66 = scmp.eq.s32.totalorder %s12, 0
      %p67 = por %p65, %p66
      %p68 = scmp.ne.s32.totalorder %s60, %s62
      %p69 = scmp.eq.s32.totalorder %s17, 3
      %p70 = por %p68, %p69
      %p71 = scmp.ne.s32.totalorder %s62, %s63
      %p72 = scmp.eq.s32.totalorder %s17, 0
      %p73 = por %p71, %p72
      %p74 = scmp.ne.s32.totalorder %s62, %s63
      %p75 = scmp.eq.s32.totalorder %s18, 3
      %p76 = por %p74, %p75
      %p78 = scmp.ne.s32.totalorder %s63, %s77
      %p79 = scmp.eq.s32.totalorder %s18, 0
      %p80 = por %p78, %p79
      %s81 = ssub.s32 %s19, %s31
      %p82 = scmp.eq.s32.totalorder %s81, 0
      %s84 = sadd.s32 %s83, 1
      %s85 = scalar_select %p82, %s83, %s84
      %p88 = pneg %p82
      %p89 = scmp.eq.s32.totalorder %s12, 3
      %p90 = por %p88, %p89
      %p91 = scmp.ne.s32.totalorder %s83, %s86
      %p92 = scmp.eq.s32.totalorder %s12, 0
      %p93 = por %p91, %p92
      %p94 = scmp.ne.s32.totalorder %s83, %s86
      %p95 = scmp.eq.s32.totalorder %s17, 3
      %p96 = por %p94, %p95
      %p97 = scmp.ne.s32.totalorder %s86, %s87
      %p98 = scmp.eq.s32.totalorder %s17, 0
      %p99 = por %p97, %p98
      %p100 = scmp.ne.s32.totalorder %s86, %s87
      %p101 = scmp.eq.s32.totalorder %s18, 3
      %p102 = por %p100, %p101
      %p104 = scmp.ne.s32.totalorder %s87, %s103
      %p105 = scmp.eq.s32.totalorder %s18, 0
      %p106 = por %p104, %p105
      %p107 = scmp.le.s32.totalorder 1, %s12
      %p108 = scmp.lt.s32.totalorder %s12, 5
      %p109 = pnand %p107, %p108
      %p110 = pneg %p109
      // Predicated region
      $region9: #{tpu_custom_call.1} parent=5 // pred_check
        _
      $region10: #{tpu_custom_call.1} parent=5 // pred_check_branch
        %112 = sbr.rel (%p109) target = $region12
      $region11: #{tpu_custom_call.1} parent=5 // pred_region
        %s113 = ssub.s32 %s12, 1
        // Predicated region
        $region13: #{tpu_custom_call.1} parent=11 // pred_check
          %p114 = pneg %p73
        $region14: #{tpu_custom_call.1} parent=11 // pred_check_branch
          %116 = sbr.rel (%p114) target = $region16
        $region15: #{tpu_custom_call.1} parent=11 // pred_region
          %118 = vsyncadd [#allocation6], 0
          %s119 = sshll.u32 %s1, 4
          %s120 = int_to_ptr.hbm [resolvable:$true] %s119
          %s121 = sshll.u32 [#allocation5], 4
          %s122 = int_to_ptr.vmem [resolvable:$true] %s121
          %127 = dma.hbm_to_vmem [thread:$0]  %s120, 3072, %s122, [#allocation6], 128, 128, 8
        $region16: #{tpu_custom_call.1} parent=11 // pred_fallthru
          _
      $region12: #{tpu_custom_call.1} parent=5 // pred_fallthru
        _
      %p128 = scmp.lt.s32.totalorder %s12, 4
      // Predicated region
      $region17: #{tpu_custom_call.1} parent=5 // pred_check
        %p129 = pneg %p128
      $region18: #{tpu_custom_call.1} parent=5 // pred_check_branch
        %131 = sbr.rel (%p129) target = $region20
      $region19: #{tpu_custom_call.1} parent=5 // pred_region
        // Predicated region
        $region21: #{tpu_custom_call.1} parent=19 // pred_check
          %p132 = pneg %p46
        $region22: #{tpu_custom_call.1} parent=19 // pred_check_branch
          %134 = sbr.rel (%p132) target = $region24
        $region23: #{tpu_custom_call.1} parent=19 // pred_region
          %s135 = sand.u32 %s36, 1
          %s136 = scalar_lea.sflag [#allocation4], %s135
          %s137 = sand.u32 %s36, 1
          %s138 = smul.addr %s137, 32
          %s139 = scalar_lea.vmem [#allocation3], %s138
          %141 = vsyncadd %s136, 0
          %s142 = smul.addr %s19, 4
          %s143 = smul.addr %s20, 8
          %s144 = sadd.s32 %s142, %s143
          %s145 = smul.addr %s144, 8
          %s146 = scalar_lea.hbm %s0, %s145
          %s147 = sshll.u32 %s146, 4
          %s148 = int_to_ptr.hbm [resolvable:$true] %s147
          %s149 = sshll.u32 %s139, 4
          %s150 = int_to_ptr.vmem [resolvable:$true] %s149
          %155 = dma.hbm_to_vmem [thread:$0]  %s148, 512, %s150, %s136, 256, 256, 16
        $region24: #{tpu_custom_call.1} parent=19 // pred_fallthru
          _
      $region20: #{tpu_custom_call.1} parent=5 // pred_fallthru
        _
      %p156 = scmp.le.s32.totalorder 1, %s12
      %p157 = scmp.lt.s32.totalorder %s12, 5
      %p158 = pnand %p156, %p157
      %p159 = pneg %p158
      // Predicated region
      $region25: #{tpu_custom_call.1} parent=5 // pred_check
        _
      $region26: #{tpu_custom_call.1} parent=5 // pred_check_branch
        %161 = sbr.rel (%p158) target = $region28
      $region27: #{tpu_custom_call.1} parent=5 // pred_region
        %s162 = ssub.s32 %s12, 1
        %s163 = sand.u32 %s39, 1
        %s164 = scalar_lea.sflag [#allocation4], %s163
        %s165 = sand.u32 %s39, 1
        %s166 = smul.addr %s165, 32
        %s167 = scalar_lea.vmem [#allocation3], %s166
        // Predicated region
        $region29: #{tpu_custom_call.1} parent=27 // pred_check
          %p168 = pneg %p52
        $region30: #{tpu_custom_call.1} parent=27 // pred_check_branch
          %170 = sbr.rel (%p168) target = $region32
        $region31: #{tpu_custom_call.1} parent=27 // pred_region
          %172 = dma.done %s164, 512
        $region32: #{tpu_custom_call.1} parent=27 // pred_fallthru
          _
        // Predicated region
        $region33: #{tpu_custom_call.1} parent=27 // pred_check
          %p173 = pneg %p73
        $region34: #{tpu_custom_call.1} parent=27 // pred_check_branch
          %175 = sbr.rel (%p173) target = $region36
        $region35: #{tpu_custom_call.1} parent=27 // pred_region
          %177 = dma.done [#allocation6], 3072
        $region36: #{tpu_custom_call.1} parent=27 // pred_fallthru
          _
        %s178 = sand.u32 %s39, 1
        %s179 = scalar_lea.sflag [#allocation4], %s178
        %s180 = sand.u32 %s39, 1
        %s181 = smul.addr %s180, 32
        %s182 = scalar_lea.vmem [#allocation3], %s181
        %p183 = pneg %p52
        %p184 = pneg %p49
        %p185 = pneg %p73
        %p186 = pneg %p70
        %p187 = pneg %p99
        %p188 = pneg %p96
        %p189 = scmp.lt.s32.totalorder %s21, 1
        %s190 = scalar_select %p189, %s21, 1
        %s191 = smul.addr %s190, 2
        %s192 = smul.addr %s191, 8
        %s193 = scalar_lea.vmem %s2, %s192
        %p194 = scmp.lt.s32.totalorder %s21, 1
        %s195 = scalar_select %p194, %s21, 1
        %s196 = smul.addr %s195, 2
        %s197 = smul.addr %s196, 8
        %s198 = scalar_lea.vmem %s2, %s197
        %v199 = vld [vmem:[%s167] sm:$0xff]
        %v200 = vld [vmem:[%s167 + $0x8] sm:$0xff]
        %v201 = vld [vmem:[%s167 + $0x10] sm:$0xff]
        %v202 = vld [vmem:[%s167 + $0x18] sm:$0xff]
        %s203 = smul.u32 %s22, 128
        %s204 = ssub.s32 %s203, 6
        %v205 = vlaneseq
        %v206 = vand.u32 %v205, 127
        %v207 = vadd.s32 %v206, 128
        %v208 = vstv %s204
        %v209 = vadd.s32 %v208, %v206
        %v210 = vadd.s32 %v208, %v207
        %vm211 = vcmp.ge.s32.totalorder %v209, 0
        %vm212 = vcmp.ge.s32.totalorder %v210, 0
        %vm213 = vcmp.lt.s32.totalorder %v209, 256
        %vm214 = vcmp.lt.s32.totalorder %v210, 256
        %vm215 = vmand %vm211, %vm213
        %vm216 = vmand %vm212, %vm214
        %v217 = vld [vmem:[#allocation5 + $0x10] sm:$0xff]
        %v218 = vld [vmem:[#allocation5 + $0x18] sm:$0xff]
        %v219 = vld [vmem:[#allocation5] sm:$0xff]
        %v220 = vld [vmem:[#allocation5 + $0x8] sm:$0xff]
        %222 = vset.pattern.permute.xlu0 0
        %223 = vperm.xlu0 %222, %v217
        %v224 = vpop.permute.xlu0 %223
        %227 = vset.pattern.permute.xlu0 0
        %228 = vperm.xlu0 %227, %v218
        %v229 = vpop.permute.xlu0 %228
        %vm231 = vcmask 130048
        %v233 = vsel %vm231, %v219, 0
        %v236 = vsel %vm231, %v220, 0
        %238 = vmatpush.msra.mxu0 0.0
        %239 = vmatpush.msra.mxu0 0.0
        %240 = vmatpush.msra.mxu0 0.0
        %241 = vmatpush.msra.mxu0 0.0
        %242 = vmatpush.msra.mxu0 0.0
        %243 = vmatpush.msra.mxu0 0.0
        %244 = vmatpush.msra.mxu0 0.0
        %245 = vmatpush.msra.mxu0 0.0
        %246 = vmatpush.msra.mxu0 0.0
        %247 = vmatpush.msra.mxu0 0.0
        %248 = vmatpush.msra.mxu0 0.0
        %249 = vmatpush.msra.mxu0 0.0
        %250 = vmatpush.msra.mxu0 0.0
        %251 = vmatpush.msra.mxu0 0.0
        %252 = vmatpush.msra.mxu0 %v201
        %253 = vmatpush.msra.mxu0 %v199
        %254 = vmatmul.f32.gmra.mxu0 %v233
        %v255 = vpop.f32.mrf.mxu0
        %v256 = vadd.f32 %v224, %v255
        %257 = vmatmul.f32.gmra.mxu0 %v236
        %v258 = vpop.f32.mrf.mxu0
        %v259 = vadd.f32 %v229, %v258
        %260 = vdwg.mxu0
        %261 = vmatpush.msra.mxu0 0.0
        %262 = vmatpush.msra.mxu0 0.0
        %263 = vmatpush.msra.mxu0 0.0
        %264 = vmatpush.msra.mxu0 0.0
        %265 = vmatpush.msra.mxu0 0.0
        %266 = vmatpush.msra.mxu0 0.0
        %267 = vmatpush.msra.mxu0 0.0
        %268 = vmatpush.msra.mxu0 0.0
        %269 = vmatpush.msra.mxu0 0.0
        %270 = vmatpush.msra.mxu0 0.0
        %271 = vmatpush.msra.mxu0 0.0
        %272 = vmatpush.msra.mxu0 0.0
        %273 = vmatpush.msra.mxu0 0.0
        %274 = vmatpush.msra.mxu0 0.0
        %275 = vmatpush.msra.mxu0 %v202
        %276 = vmatpush.msra.mxu0 %v200
        %277 = vmatmul.f32.gmra.mxu0 %v233
        %v278 = vpop.f32.mrf.mxu0
        %v279 = vadd.f32 %v224, %v278
        %280 = vmatmul.f32.gmra.mxu0 %v236
        %v281 = vpop.f32.mrf.mxu0
        %v282 = vadd.f32 %v229, %v281
        %283 = vdwg.mxu0
        %v284 = vmax.f32 %v256, 0.0
        %v285 = vmax.f32 %v279, 0.0
        %v286 = vmax.f32 %v259, 0.0
        %v287 = vmax.f32 %v282, 0.0
        %288 = vset.pattern.permute.xlu0 1
        %289 = vperm.xlu0 %288, %v217
        %v290 = vpop.permute.xlu0 %289
        %292 = vset.pattern.permute.xlu0 1
        %293 = vperm.xlu0 %292, %v218
        %v294 = vpop.permute.xlu0 %293
        %v296 = vmul.f32 %v284, %v290
        %v297 = vmul.f32 %v285, %v290
        %v298 = vmul.f32 %v286, %v294
        %v299 = vmul.f32 %v287, %v294
        %300 = vset.pattern.permute.xlu0 2
        %301 = vperm.xlu0 %300, %v217
        %v302 = vpop.permute.xlu0 %301
        %304 = vset.pattern.permute.xlu0 2
        %305 = vperm.xlu0 %304, %v218
        %v306 = vpop.permute.xlu0 %305
        %v308 = vadd.f32 %v296, %v302
        %v309 = vadd.f32 %v297, %v302
        %v310 = vadd.f32 %v298, %v306
        %v311 = vadd.f32 %v299, %v306
        %v312 = vsel %vm215, 1, 0
        %v313 = vsel %vm216, 1, 0
        %vm314 = vcmp.eq.s32.totalorder %v312, 1
        %vm315 = vcmp.eq.s32.totalorder %v313, 1
        %v316 = vsel %vm314, %v308, 0.0
        %v317 = vsel %vm315, %v309, 0.0
        %v318 = vsel %vm314, %v310, 0.0
        %v319 = vsel %vm315, %v311, 0.0
        %324 = vrot.lane.b32.xlu0 %v316, 2
        %v325 = vpop.permute.xlu0 %324
        %326 = vrot.lane.b32.xlu0 %v317, 2
        %v327 = vpop.permute.xlu0 %326
        %328 = vrot.lane.b32.xlu0 %v318, 2
        %v329 = vpop.permute.xlu0 %328
        %330 = vrot.lane.b32.xlu0 %v319, 2
        %v331 = vpop.permute.xlu0 %330
        %vm332 = vcmask 15360
        %v333 = vsel %vm332, %v325, %v327
        %v334 = vsel %vm332, %v329, %v331
        %v339 = vsel %vm332, 0.0, %v325
        %v340 = vsel %vm332, 0.0, %v329
        %vm341 = vcmask 113664
        %v342 = vsel %vm341, %v333, 0.0
        %v343 = vsel %vm341, %v334, 0.0
        %344 = vst [vmem:[#allocation2] sm:$0xff] %v339
        %vm345 = vcmask 97280
        %346 = vst.msk [vmem:[#allocation2 + $0x8] sm:$0xff] %vm345, %v342
        %347 = vst [vmem:[#allocation2 + $0x10] sm:$0xff] %v340
        %348 = vst.msk [vmem:[#allocation2 + $0x18] sm:$0xff] %vm345, %v343
        %353 = vrot.lane.b32.xlu0 %v339, 126
        %v354 = vpop.permute.xlu0 %353
        %355 = vrot.lane.b32.xlu0 %v342, 126
        %v356 = vpop.permute.xlu0 %355
        %357 = vrot.lane.b32.xlu0 %v340, 126
        %v358 = vpop.permute.xlu0 %357
        %359 = vrot.lane.b32.xlu0 %v343, 126
        %v360 = vpop.permute.xlu0 %359
        %vm361 = vcmask 1031168
        %v362 = vsel %vm361, %v354, %v356
        %v363 = vsel %vm361, %v358, %v360
        %368 = vst [vmem:[#allocation2 + $0x20] sm:$0xff] %v362
        %369 = vst.msk [vmem:[#allocation2 + $0x28] sm:$0xff] %vm345, %v356
        %370 = vst [vmem:[#allocation2 + $0x30] sm:$0xff] %v363
        %371 = vst.msk [vmem:[#allocation2 + $0x38] sm:$0xff] %vm345, %v360
        %372 = vrot.lane.b32.xlu0 %v339, 124
        %v373 = vpop.permute.xlu0 %372
        %374 = vrot.lane.b32.xlu0 %v342, 124
        %v375 = vpop.permute.xlu0 %374
        %376 = vrot.lane.b32.xlu0 %v340, 124
        %v377 = vpop.permute.xlu0 %376
        %378 = vrot.lane.b32.xlu0 %v343, 124
        %v379 = vpop.permute.xlu0 %378
        %vm380 = vcmask 1014784
        %v381 = vsel %vm380, %v373, %v375
        %v382 = vsel %vm380, %v377, %v379
        %387 = vst [vmem:[#allocation2 + $0x40] sm:$0xff] %v381
        %388 = vst.msk [vmem:[#allocation2 + $0x48] sm:$0xff] %vm345, %v375
        %389 = vst [vmem:[#allocation2 + $0x50] sm:$0xff] %v382
        %390 = vst.msk [vmem:[#allocation2 + $0x58] sm:$0xff] %vm345, %v379
        %v391 = vld [vmem:[#allocation5 + $0x20] sm:$0xff]
        %v392 = vld [vmem:[#allocation5 + $0x28] sm:$0xff]
        %v393 = vld [vmem:[#allocation5 + $0x40] sm:$0xff]
        %v394 = vld [vmem:[#allocation2] sm:$0xff]
        %v395 = vld [vmem:[#allocation2 + $0x8] sm:$0xff]
        %v396 = vld [vmem:[#allocation2 + $0x10] sm:$0xff]
        %v397 = vld [vmem:[#allocation2 + $0x18] sm:$0xff]
        %v398 = vld [vmem:[#allocation2 + $0x20] sm:$0xff]
        %v399 = vld [vmem:[#allocation2 + $0x28] sm:$0xff]
        %v400 = vld [vmem:[#allocation2 + $0x30] sm:$0xff]
        %v401 = vld [vmem:[#allocation2 + $0x38] sm:$0xff]
        %v402 = vld [vmem:[#allocation2 + $0x40] sm:$0xff]
        %v403 = vld [vmem:[#allocation2 + $0x48] sm:$0xff]
        %v404 = vld [vmem:[#allocation2 + $0x50] sm:$0xff]
        %v405 = vld [vmem:[#allocation2 + $0x58] sm:$0xff]
        %v406 = vld [vmem:[#allocation5 + $0x48] sm:$0xff]
        %408 = vset.pattern.permute.xlu0 0
        %409 = vperm.xlu0 %408, %v406
        %v410 = vpop.permute.xlu0 %409
        %vm412 = vcmask 392192
        %v414 = vsel %vm412, %v393, 0
        %416 = vmatpush.msra.mxu0 0.0
        %417 = vmatpush.msra.mxu0 0.0
        %418 = vmatpush.msra.mxu0 0.0
        %419 = vmatpush.msra.mxu0 0.0
        %420 = vmatpush.msra.mxu0 0.0
        %421 = vmatpush.msra.mxu0 0.0
        %422 = vmatpush.msra.mxu0 0.0
        %423 = vmatpush.msra.mxu0 0.0
        %424 = vmatpush.msra.mxu0 0.0
        %425 = vmatpush.msra.mxu0 0.0
        %426 = vmatpush.msra.mxu0 %v404
        %427 = vmatpush.msra.mxu0 %v402
        %428 = vmatpush.msra.mxu0 %v400
        %429 = vmatpush.msra.mxu0 %v398
        %430 = vmatpush.msra.mxu0 %v396
        %431 = vmatpush.msra.mxu0 %v394
        %432 = vmatmul.f32.gmra.mxu0 %v414
        %v433 = vpop.f32.mrf.mxu0
        %v434 = vadd.f32 %v410, %v433
        %435 = vdwg.mxu0
        %436 = vmatpush.msra.mxu0 0.0
        %437 = vmatpush.msra.mxu0 0.0
        %438 = vmatpush.msra.mxu0 0.0
        %439 = vmatpush.msra.mxu0 0.0
        %440 = vmatpush.msra.mxu0 0.0
        %441 = vmatpush.msra.mxu0 0.0
        %442 = vmatpush.msra.mxu0 0.0
        %443 = vmatpush.msra.mxu0 0.0
        %444 = vmatpush.msra.mxu0 0.0
        %445 = vmatpush.msra.mxu0 0.0
        %446 = vmatpush.msra.mxu0 %v405
        %447 = vmatpush.msra.mxu0 %v403
        %448 = vmatpush.msra.mxu0 %v401
        %449 = vmatpush.msra.mxu0 %v399
        %450 = vmatpush.msra.mxu0 %v397
        %451 = vmatpush.msra.mxu0 %v395
        %452 = vmatmul.f32.gmra.mxu0 %v414
        %v453 = vpop.f32.mrf.mxu0
        %v454 = vadd.f32 %v410, %v453
        %455 = vdwg.mxu0
        %v456 = vmax.f32 %v434, 0.0
        %v457 = vmax.f32 %v454, 0.0
        %458 = vset.pattern.permute.xlu0 1
        %459 = vperm.xlu0 %458, %v406
        %v460 = vpop.permute.xlu0 %459
        %v462 = vmul.f32 %v456, %v460
        %v463 = vmul.f32 %v457, %v460
        %464 = vset.pattern.permute.xlu0 2
        %465 = vperm.xlu0 %464, %v406
        %v466 = vpop.permute.xlu0 %465
        %v468 = vadd.f32 %v462, %v466
        %v469 = vadd.f32 %v463, %v466
        %v470 = vsel %vm314, %v468, 0.0
        %v471 = vsel %vm315, %v469, 0.0
        %v472 = vld [vmem:[#allocation5 + $0x50] sm:$0xff]
        %v473 = vld [vmem:[#allocation5 + $0x58] sm:$0xff]
        %vm474 = vcmask 64512
        %v476 = vsel %vm474, %v472, 0
        %v479 = vsel %vm474, %v473, 0
        %481 = vmatpush.msra.mxu0 0.0
        %482 = vmatpush.msra.mxu0 0.0
        %483 = vmatpush.msra.mxu0 0.0
        %484 = vmatpush.msra.mxu0 0.0
        %485 = vmatpush.msra.mxu0 0.0
        %486 = vmatpush.msra.mxu0 0.0
        %487 = vmatpush.msra.mxu0 0.0
        %488 = vmatpush.msra.mxu0 0.0
        %489 = vmatpush.msra.mxu0 0.0
        %490 = vmatpush.msra.mxu0 0.0
        %491 = vmatpush.msra.mxu0 0.0
        %492 = vmatpush.msra.mxu0 0.0
        %493 = vmatpush.msra.mxu0 0.0
        %494 = vmatpush.msra.mxu0 0.0
        %495 = vmatpush.msra.mxu0 0.0
        %496 = vmatpush.msra.mxu0 %v470
        %497 = vmatmul.f32.gmra.mxu0 %v476
        %v498 = vpop.f32.mrf.mxu0
        %v499 = vadd.f32 0.0, %v498
        %500 = vmatmul.f32.gmra.mxu0 %v479
        %v501 = vpop.f32.mrf.mxu0
        %v502 = vadd.f32 0.0, %v501
        %503 = vdwg.mxu0
        %504 = vmatpush.msra.mxu0 0.0
        %505 = vmatpush.msra.mxu0 0.0
        %506 = vmatpush.msra.mxu0 0.0
        %507 = vmatpush.msra.mxu0 0.0
        %508 = vmatpush.msra.mxu0 0.0
        %509 = vmatpush.msra.mxu0 0.0
        %510 = vmatpush.msra.mxu0 0.0
        %511 = vmatpush.msra.mxu0 0.0
        %512 = vmatpush.msra.mxu0 0.0
        %513 = vmatpush.msra.mxu0 0.0
        %514 = vmatpush.msra.mxu0 0.0
        %515 = vmatpush.msra.mxu0 0.0
        %516 = vmatpush.msra.mxu0 0.0
        %517 = vmatpush.msra.mxu0 0.0
        %518 = vmatpush.msra.mxu0 0.0
        %519 = vmatpush.msra.mxu0 %v471
        %520 = vmatmul.f32.gmra.mxu0 %v476
        %v521 = vpop.f32.mrf.mxu0
        %v522 = vadd.f32 0.0, %v521
        %523 = vmatmul.f32.gmra.mxu0 %v479
        %v524 = vpop.f32.mrf.mxu0
        %v525 = vadd.f32 0.0, %v524
        %526 = vdwg.mxu0
        %v528 = vsel %vm231, %v391, 0
        %v531 = vsel %vm231, %v392, 0
        %533 = vmatpush.msra.mxu0 0.0
        %534 = vmatpush.msra.mxu0 0.0
        %535 = vmatpush.msra.mxu0 0.0
        %536 = vmatpush.msra.mxu0 0.0
        %537 = vmatpush.msra.mxu0 0.0
        %538 = vmatpush.msra.mxu0 0.0
        %539 = vmatpush.msra.mxu0 0.0
        %540 = vmatpush.msra.mxu0 0.0
        %541 = vmatpush.msra.mxu0 0.0
        %542 = vmatpush.msra.mxu0 0.0
        %543 = vmatpush.msra.mxu0 0.0
        %544 = vmatpush.msra.mxu0 0.0
        %545 = vmatpush.msra.mxu0 0.0
        %546 = vmatpush.msra.mxu0 0.0
        %547 = vmatpush.msra.mxu0 %v318
        %548 = vmatpush.msra.mxu0 %v316
        %549 = vmatmul.f32.gmra.mxu0 %v528
        %v550 = vpop.f32.mrf.mxu0
        %v551 = vadd.f32 %v499, %v550
        %552 = vmatmul.f32.gmra.mxu0 %v531
        %v553 = vpop.f32.mrf.mxu0
        %v554 = vadd.f32 %v502, %v553
        %555 = vdwg.mxu0
        %556 = vmatpush.msra.mxu0 0.0
        %557 = vmatpush.msra.mxu0 0.0
        %558 = vmatpush.msra.mxu0 0.0
        %559 = vmatpush.msra.mxu0 0.0
        %560 = vmatpush.msra.mxu0 0.0
        %561 = vmatpush.msra.mxu0 0.0
        %562 = vmatpush.msra.mxu0 0.0
        %563 = vmatpush.msra.mxu0 0.0
        %564 = vmatpush.msra.mxu0 0.0
        %565 = vmatpush.msra.mxu0 0.0
        %566 = vmatpush.msra.mxu0 0.0
        %567 = vmatpush.msra.mxu0 0.0
        %568 = vmatpush.msra.mxu0 0.0
        %569 = vmatpush.msra.mxu0 0.0
        %570 = vmatpush.msra.mxu0 %v319
        %571 = vmatpush.msra.mxu0 %v317
        %572 = vmatmul.f32.gmra.mxu0 %v528
        %v573 = vpop.f32.mrf.mxu0
        %v574 = vadd.f32 %v522, %v573
        %575 = vmatmul.f32.gmra.mxu0 %v531
        %v576 = vpop.f32.mrf.mxu0
        %v577 = vadd.f32 %v525, %v576
        %578 = vdwg.mxu0
        %581 = vrot.lane.b32.xlu0 %v470, 2
        %v582 = vpop.permute.xlu0 %581
        %583 = vrot.lane.b32.xlu0 %v471, 2
        %v584 = vpop.permute.xlu0 %583
        %v585 = vsel %vm332, %v582, %v584
        %v588 = vsel %vm332, 0.0, %v582
        %v589 = vsel %vm341, %v585, 0.0
        %590 = vst [vmem:[#allocation2 + $0x60] sm:$0xff] %v588
        %591 = vst.msk [vmem:[#allocation2 + $0x68] sm:$0xff] %vm345, %v589
        %594 = vrot.lane.b32.xlu0 %v588, 126
        %v595 = vpop.permute.xlu0 %594
        %596 = vrot.lane.b32.xlu0 %v589, 126
        %v597 = vpop.permute.xlu0 %596
        %v598 = vsel %vm361, %v595, %v597
        %601 = vst [vmem:[#allocation2 + $0x70] sm:$0xff] %v598
        %602 = vst.msk [vmem:[#allocation2 + $0x78] sm:$0xff] %vm345, %v597
        %603 = vrot.lane.b32.xlu0 %v588, 124
        %v604 = vpop.permute.xlu0 %603
        %605 = vrot.lane.b32.xlu0 %v589, 124
        %v606 = vpop.permute.xlu0 %605
        %v607 = vsel %vm380, %v604, %v606
        %610 = vst [vmem:[#allocation2 + $0x80] sm:$0xff] %v607
        %611 = vst.msk [vmem:[#allocation2 + $0x88] sm:$0xff] %vm345, %v606
        %v612 = vld [vmem:[#allocation5 + $0x60] sm:$0xff]
        %v613 = vld [vmem:[#allocation5 + $0x68] sm:$0xf]
        %v614 = vld [vmem:[#allocation2] sm:$0xff]
        %v615 = vld [vmem:[#allocation2 + $0x8] sm:$0xff]
        %v616 = vld [vmem:[#allocation2 + $0x10] sm:$0xff]
        %v617 = vld [vmem:[#allocation2 + $0x18] sm:$0xff]
        %v618 = vld [vmem:[#allocation2 + $0x20] sm:$0xff]
        %v619 = vld [vmem:[#allocation2 + $0x28] sm:$0xff]
        %v620 = vld [vmem:[#allocation2 + $0x30] sm:$0xff]
        %v621 = vld [vmem:[#allocation2 + $0x38] sm:$0xff]
        %v622 = vld [vmem:[#allocation2 + $0x40] sm:$0xff]
        %v623 = vld [vmem:[#allocation2 + $0x48] sm:$0xff]
        %v624 = vld [vmem:[#allocation2 + $0x50] sm:$0xff]
        %v625 = vld [vmem:[#allocation2 + $0x58] sm:$0xff]
        %v626 = vld [vmem:[#allocation2 + $0x60] sm:$0xff]
        %v627 = vld [vmem:[#allocation2 + $0x68] sm:$0xff]
        %v628 = vld [vmem:[#allocation2 + $0x70] sm:$0xff]
        %v629 = vld [vmem:[#allocation2 + $0x78] sm:$0xff]
        %v630 = vld [vmem:[#allocation2 + $0x80] sm:$0xff]
        %v631 = vld [vmem:[#allocation2 + $0x88] sm:$0xff]
        %v632 = vld [vmem:[#allocation5 + $0x70] sm:$0xff]
        %v633 = vld [vmem:[#allocation5 + $0x78] sm:$0xf]
        %635 = vset.pattern.permute.xlu0 0
        %636 = vperm.xlu0 %635, %v632
        %v637 = vpop.permute.xlu0 %636
        %640 = vset.pattern.permute.xlu0 0
        %641 = vperm.xlu0 %640, %v633
        %v642 = vpop.permute.xlu0 %641
        %vm644 = vcmask 588800
        %v646 = vsel %vm644, %v612, 0
        %v649 = vsel %vm644, %v613, 0
        %651 = vmatpush.msra.mxu0 0.0
        %652 = vmatpush.msra.mxu0 0.0
        %653 = vmatpush.msra.mxu0 0.0
        %654 = vmatpush.msra.mxu0 0.0
        %655 = vmatpush.msra.mxu0 0.0
        %656 = vmatpush.msra.mxu0 0.0
        %657 = vmatpush.msra.mxu0 0.0
        %658 = vmatpush.msra.mxu0 %v630
        %659 = vmatpush.msra.mxu0 %v628
        %660 = vmatpush.msra.mxu0 %v626
        %661 = vmatpush.msra.mxu0 %v624
        %662 = vmatpush.msra.mxu0 %v622
        %663 = vmatpush.msra.mxu0 %v620
        %664 = vmatpush.msra.mxu0 %v618
        %665 = vmatpush.msra.mxu0 %v616
        %666 = vmatpush.msra.mxu0 %v614
        %667 = vmatmul.f32.gmra.mxu0 %v646
        %v668 = vpop.f32.mrf.mxu0
        %v669 = vadd.f32 %v637, %v668
        %670 = vmatmul.f32.gmra.mxu0 %v649
        %v671 = vpop.f32.mrf.mxu0
        %v672 = vadd.f32 %v642, %v671
        %673 = vdwg.mxu0
        %674 = vmatpush.msra.mxu0 0.0
        %675 = vmatpush.msra.mxu0 0.0
        %676 = vmatpush.msra.mxu0 0.0
        %677 = vmatpush.msra.mxu0 0.0
        %678 = vmatpush.msra.mxu0 0.0
        %679 = vmatpush.msra.mxu0 0.0
        %680 = vmatpush.msra.mxu0 0.0
        %681 = vmatpush.msra.mxu0 %v631
        %682 = vmatpush.msra.mxu0 %v629
        %683 = vmatpush.msra.mxu0 %v627
        %684 = vmatpush.msra.mxu0 %v625
        %685 = vmatpush.msra.mxu0 %v623
        %686 = vmatpush.msra.mxu0 %v621
        %687 = vmatpush.msra.mxu0 %v619
        %688 = vmatpush.msra.mxu0 %v617
        %689 = vmatpush.msra.mxu0 %v615
        %690 = vmatmul.f32.gmra.mxu0 %v646
        %v691 = vpop.f32.mrf.mxu0
        %v692 = vadd.f32 %v637, %v691
        %693 = vmatmul.f32.gmra.mxu0 %v649
        %v694 = vpop.f32.mrf.mxu0
        %v695 = vadd.f32 %v642, %v694
        %696 = vdwg.mxu0
        %v697 = vmax.f32 %v669, 0.0
        %v698 = vmax.f32 %v692, 0.0
        %v699 = vmax.f32 %v672, 0.0
        %v700 = vmax.f32 %v695, 0.0
        %701 = vset.pattern.permute.xlu0 1
        %702 = vperm.xlu0 %701, %v632
        %v703 = vpop.permute.xlu0 %702
        %705 = vset.pattern.permute.xlu0 1
        %706 = vperm.xlu0 %705, %v633
        %v707 = vpop.permute.xlu0 %706
        %v709 = vmul.f32 %v697, %v703
        %v710 = vmul.f32 %v698, %v703
        %v711 = vmul.f32 %v699, %v707
        %v712 = vmul.f32 %v700, %v707
        %713 = vset.pattern.permute.xlu0 2
        %714 = vperm.xlu0 %713, %v632
        %v715 = vpop.permute.xlu0 %714
        %717 = vset.pattern.permute.xlu0 2
        %718 = vperm.xlu0 %717, %v633
        %v719 = vpop.permute.xlu0 %718
        %v721 = vadd.f32 %v709, %v715
        %v722 = vadd.f32 %v710, %v715
        %v723 = vadd.f32 %v711, %v719
        %v724 = vadd.f32 %v712, %v719
        %v725 = vsel %vm314, %v721, 0.0
        %v726 = vsel %vm315, %v722, 0.0
        %v727 = vsel %vm314, %v723, 0.0
        %v728 = vsel %vm315, %v724, 0.0
        %v729 = vld [vmem:[#allocation5 + $0x80] sm:$0xff]
        %v730 = vld [vmem:[#allocation5 + $0x88] sm:$0xff]
        %v732 = vsel %vm345, %v729, 0
        %v735 = vsel %vm345, %v730, 0
        %vm737 = vcmask 1043456
        %v739 = vsel %vm737, %v727, 0
        %v742 = vsel %vm737, %v728, 0
        %744 = vmatpush.msra.mxu0 0.0
        %745 = vmatpush.msra.mxu0 0.0
        %746 = vmatpush.msra.mxu0 0.0
        %747 = vmatpush.msra.mxu0 0.0
        %748 = vmatpush.msra.mxu0 0.0
        %749 = vmatpush.msra.mxu0 0.0
        %750 = vmatpush.msra.mxu0 0.0
        %751 = vmatpush.msra.mxu0 0.0
        %752 = vmatpush.msra.mxu0 0.0
        %753 = vmatpush.msra.mxu0 0.0
        %754 = vmatpush.msra.mxu0 0.0
        %755 = vmatpush.msra.mxu0 0.0
        %756 = vmatpush.msra.mxu0 0.0
        %757 = vmatpush.msra.mxu0 0.0
        %758 = vmatpush.msra.mxu0 %v739
        %759 = vmatpush.msra.mxu0 %v725
        %760 = vmatmul.f32.gmra.mxu0 %v732
        %v761 = vpop.f32.mrf.mxu0
        %v762 = vadd.f32 0.0, %v761
        %763 = vmatmul.f32.gmra.mxu0 %v735
        %v764 = vpop.f32.mrf.mxu0
        %v765 = vadd.f32 0.0, %v764
        %766 = vdwg.mxu0
        %767 = vmatpush.msra.mxu0 0.0
        %768 = vmatpush.msra.mxu0 0.0
        %769 = vmatpush.msra.mxu0 0.0
        %770 = vmatpush.msra.mxu0 0.0
        %771 = vmatpush.msra.mxu0 0.0
        %772 = vmatpush.msra.mxu0 0.0
        %773 = vmatpush.msra.mxu0 0.0
        %774 = vmatpush.msra.mxu0 0.0
        %775 = vmatpush.msra.mxu0 0.0
        %776 = vmatpush.msra.mxu0 0.0
        %777 = vmatpush.msra.mxu0 0.0
        %778 = vmatpush.msra.mxu0 0.0
        %779 = vmatpush.msra.mxu0 0.0
        %780 = vmatpush.msra.mxu0 0.0
        %781 = vmatpush.msra.mxu0 %v742
        %782 = vmatpush.msra.mxu0 %v726
        %783 = vmatmul.f32.gmra.mxu0 %v732
        %v784 = vpop.f32.mrf.mxu0
        %v785 = vadd.f32 0.0, %v784
        %786 = vmatmul.f32.gmra.mxu0 %v735
        %v787 = vpop.f32.mrf.mxu0
        %v788 = vadd.f32 0.0, %v787
        %789 = vdwg.mxu0
        %v790 = vadd.f32 %v551, %v762
        %v791 = vadd.f32 %v574, %v785
        %v792 = vadd.f32 %v554, %v765
        %v793 = vadd.f32 %v577, %v788
        %796 = vrot.lane.b32.xlu0 %v725, 2
        %v797 = vpop.permute.xlu0 %796
        %798 = vrot.lane.b32.xlu0 %v726, 2
        %v799 = vpop.permute.xlu0 %798
        %800 = vrot.lane.b32.xlu0 %v727, 2
        %v801 = vpop.permute.xlu0 %800
        %802 = vrot.lane.b32.xlu0 %v728, 2
        %v803 = vpop.permute.xlu0 %802
        %v804 = vsel %vm332, %v797, %v799
        %v805 = vsel %vm332, %v801, %v803
        %v810 = vsel %vm332, 0.0, %v797
        %v811 = vsel %vm332, 0.0, %v801
        %v812 = vsel %vm341, %v804, 0.0
        %v813 = vsel %vm341, %v805, 0.0
        %814 = vst [vmem:[#allocation2 + $0x60] sm:$0xff] %v810
        %815 = vst.msk [vmem:[#allocation2 + $0x68] sm:$0xff] %vm345, %v812
        %816 = vst [vmem:[#allocation2 + $0x70] sm:$0xf] %v811
        %vm817 = vcmask 93184
        %818 = vst.msk [vmem:[#allocation2 + $0x78] sm:$0xf] %vm817, %v813
        %v823 = vrot.slane %v810, 4
        %v824 = vrot.slane %v812, 4
        %v825 = vrot.slane %v811, 4
        %v826 = vsel %vm737, %v823, %v825
        %v827 = vrot.slane %v813, 4
        %v828 = vsel %vm737, %v824, %v827
        %829 = vrot.lane.b32.xlu0 %v823, 126
        %v830 = vpop.permute.xlu0 %829
        %831 = vrot.lane.b32.xlu0 %v824, 126
        %v832 = vpop.permute.xlu0 %831
        %833 = vrot.lane.b32.xlu0 %v826, 126
        %v834 = vpop.permute.xlu0 %833
        %835 = vrot.lane.b32.xlu0 %v828, 126
        %v836 = vpop.permute.xlu0 %835
        %v837 = vsel %vm361, %v830, %v832
        %v838 = vsel %vm361, %v834, %v836
        %843 = vst [vmem:[#allocation2 + $0x70] sm:$0xf0] %v837
        %vm844 = vcmask 97284
        %845 = vst.msk [vmem:[#allocation2 + $0x78] sm:$0xf0] %vm844, %v832
        %846 = vst [vmem:[#allocation2 + $0x80] sm:$0xff] %v838
        %847 = vst.msk [vmem:[#allocation2 + $0x88] sm:$0xff] %vm345, %v836
        %848 = vrot.lane.b32.xlu0 %v810, 124
        %v849 = vpop.permute.xlu0 %848
        %850 = vrot.lane.b32.xlu0 %v812, 124
        %v851 = vpop.permute.xlu0 %850
        %852 = vrot.lane.b32.xlu0 %v811, 124
        %v853 = vpop.permute.xlu0 %852
        %854 = vrot.lane.b32.xlu0 %v813, 124
        %v855 = vpop.permute.xlu0 %854
        %v856 = vsel %vm380, %v849, %v851
        %v857 = vsel %vm380, %v853, %v855
        %862 = vst [vmem:[#allocation2 + $0x90] sm:$0xff] %v856
        %863 = vst.msk [vmem:[#allocation2 + $0x98] sm:$0xff] %vm345, %v851
        %864 = vst [vmem:[#allocation2 + $0xa0] sm:$0xf] %v857
        %865 = vst.msk [vmem:[#allocation2 + $0xa8] sm:$0xf] %vm817, %v855
        %v866 = vld [vmem:[#allocation5 + $0x90] sm:$0xff]
        %v867 = vld [vmem:[#allocation5 + $0x98] sm:$0xff]
        %v868 = vld [vmem:[#allocation2] sm:$0xff]
        %v869 = vld [vmem:[#allocation2 + $0x8] sm:$0xff]
        %v870 = vld [vmem:[#allocation2 + $0x10] sm:$0xff]
        %v871 = vld [vmem:[#allocation2 + $0x18] sm:$0xff]
        %v872 = vld [vmem:[#allocation2 + $0x20] sm:$0xff]
        %v873 = vld [vmem:[#allocation2 + $0x28] sm:$0xff]
        %v874 = vld [vmem:[#allocation2 + $0x30] sm:$0xff]
        %v875 = vld [vmem:[#allocation2 + $0x38] sm:$0xff]
        %v876 = vld [vmem:[#allocation2 + $0x40] sm:$0xff]
        %v877 = vld [vmem:[#allocation2 + $0x48] sm:$0xff]
        %v878 = vld [vmem:[#allocation2 + $0x50] sm:$0xff]
        %v879 = vld [vmem:[#allocation2 + $0x58] sm:$0xff]
        %v880 = vld [vmem:[#allocation2 + $0x60] sm:$0xff]
        %v881 = vld [vmem:[#allocation2 + $0x68] sm:$0xff]
        %v882 = vld [vmem:[#allocation2 + $0x70] sm:$0xff]
        %v883 = vld [vmem:[#allocation2 + $0x78] sm:$0xff]
        %v884 = vld [vmem:[#allocation2 + $0x80] sm:$0xff]
        %v885 = vld [vmem:[#allocation2 + $0x88] sm:$0xff]
        %v886 = vld [vmem:[#allocation2 + $0x90] sm:$0xff]
        %v887 = vld [vmem:[#allocation2 + $0x98] sm:$0xff]
        %v888 = vld [vmem:[#allocation2 + $0xa0] sm:$0xf]
        %v889 = vld [vmem:[#allocation2 + $0xa8] sm:$0xf]
        %v890 = vld [vmem:[#allocation5 + $0xa0] sm:$0xff]
        %v891 = vld [vmem:[#allocation5 + $0xa8] sm:$0xff]
        %893 = vset.pattern.permute.xlu0 0
        %894 = vperm.xlu0 %893, %v890
        %v895 = vpop.permute.xlu0 %894
        %898 = vset.pattern.permute.xlu0 0
        %899 = vperm.xlu0 %898, %v891
        %v900 = vpop.permute.xlu0 %899
        %vm902 = vcmask 687104
        %v904 = vsel %vm902, %v866, 0
        %v907 = vsel %vm902, %v867, 0
        %v910 = vsel %vm737, %v888, 0
        %v913 = vsel %vm737, %v889, 0
        %915 = vmatpush.msra.mxu0 0.0
        %916 = vmatpush.msra.mxu0 0.0
        %917 = vmatpush.msra.mxu0 0.0
        %918 = vmatpush.msra.mxu0 0.0
        %919 = vmatpush.msra.mxu0 0.0
        %920 = vmatpush.msra.mxu0 %v910
        %921 = vmatpush.msra.mxu0 %v886
        %922 = vmatpush.msra.mxu0 %v884
        %923 = vmatpush.msra.mxu0 %v882
        %924 = vmatpush.msra.mxu0 %v880
        %925 = vmatpush.msra.mxu0 %v878
        %926 = vmatpush.msra.mxu0 %v876
        %927 = vmatpush.msra.mxu0 %v874
        %928 = vmatpush.msra.mxu0 %v872
        %929 = vmatpush.msra.mxu0 %v870
        %930 = vmatpush.msra.mxu0 %v868
        %931 = vmatmul.f32.gmra.mxu0 %v904
        %v932 = vpop.f32.mrf.mxu0
        %v933 = vadd.f32 %v895, %v932
        %934 = vmatmul.f32.gmra.mxu0 %v907
        %v935 = vpop.f32.mrf.mxu0
        %v936 = vadd.f32 %v900, %v935
        %937 = vdwg.mxu0
        %938 = vmatpush.msra.mxu0 0.0
        %939 = vmatpush.msra.mxu0 0.0
        %940 = vmatpush.msra.mxu0 0.0
        %941 = vmatpush.msra.mxu0 0.0
        %942 = vmatpush.msra.mxu0 0.0
        %943 = vmatpush.msra.mxu0 %v913
        %944 = vmatpush.msra.mxu0 %v887
        %945 = vmatpush.msra.mxu0 %v885
        %946 = vmatpush.msra.mxu0 %v883
        %947 = vmatpush.msra.mxu0 %v881
        %948 = vmatpush.msra.mxu0 %v879
        %949 = vmatpush.msra.mxu0 %v877
        %950 = vmatpush.msra.mxu0 %v875
        %951 = vmatpush.msra.mxu0 %v873
        %952 = vmatpush.msra.mxu0 %v871
        %953 = vmatpush.msra.mxu0 %v869
        %954 = vmatmul.f32.gmra.mxu0 %v904
        %v955 = vpop.f32.mrf.mxu0
        %v956 = vadd.f32 %v895, %v955
        %957 = vmatmul.f32.gmra.mxu0 %v907
        %v958 = vpop.f32.mrf.mxu0
        %v959 = vadd.f32 %v900, %v958
        %960 = vdwg.mxu0
        %v961 = vmax.f32 %v933, 0.0
        %v962 = vmax.f32 %v956, 0.0
        %v963 = vmax.f32 %v936, 0.0
        %v964 = vmax.f32 %v959, 0.0
        %965 = vset.pattern.permute.xlu0 1
        %966 = vperm.xlu0 %965, %v890
        %v967 = vpop.permute.xlu0 %966
        %969 = vset.pattern.permute.xlu0 1
        %970 = vperm.xlu0 %969, %v891
        %v971 = vpop.permute.xlu0 %970
        %v973 = vmul.f32 %v961, %v967
        %v974 = vmul.f32 %v962, %v967
        %v975 = vmul.f32 %v963, %v971
        %v976 = vmul.f32 %v964, %v971
        %977 = vset.pattern.permute.xlu0 2
        %978 = vperm.xlu0 %977, %v890
        %v979 = vpop.permute.xlu0 %978
        %981 = vset.pattern.permute.xlu0 2
        %982 = vperm.xlu0 %981, %v891
        %v983 = vpop.permute.xlu0 %982
        %v985 = vadd.f32 %v973, %v979
        %v986 = vadd.f32 %v974, %v979
        %v987 = vadd.f32 %v975, %v983
        %v988 = vadd.f32 %v976, %v983
        %v989 = vsel %vm314, %v985, 0.0
        %v990 = vsel %vm315, %v986, 0.0
        %v991 = vsel %vm314, %v987, 0.0
        %v992 = vsel %vm315, %v988, 0.0
        %v993 = vld [vmem:[#allocation5 + $0xb0] sm:$0xff]
        %v994 = vld [vmem:[#allocation5 + $0xb8] sm:$0xff]
        %v996 = vsel %vm231, %v993, 0
        %v999 = vsel %vm231, %v994, 0
        %1001 = vmatpush.msra.mxu0 0.0
        %1002 = vmatpush.msra.mxu0 0.0
        %1003 = vmatpush.msra.mxu0 0.0
        %1004 = vmatpush.msra.mxu0 0.0
        %1005 = vmatpush.msra.mxu0 0.0
        %1006 = vmatpush.msra.mxu0 0.0
        %1007 = vmatpush.msra.mxu0 0.0
        %1008 = vmatpush.msra.mxu0 0.0
        %1009 = vmatpush.msra.mxu0 0.0
        %1010 = vmatpush.msra.mxu0 0.0
        %1011 = vmatpush.msra.mxu0 0.0
        %1012 = vmatpush.msra.mxu0 0.0
        %1013 = vmatpush.msra.mxu0 0.0
        %1014 = vmatpush.msra.mxu0 0.0
        %1015 = vmatpush.msra.mxu0 %v991
        %1016 = vmatpush.msra.mxu0 %v989
        %1017 = vmatmul.f32.gmra.mxu0 %v996
        %v1018 = vpop.f32.mrf.mxu0
        %v1019 = vadd.f32 0.0, %v1018
        %1020 = vmatmul.f32.gmra.mxu0 %v999
        %v1021 = vpop.f32.mrf.mxu0
        %v1022 = vadd.f32 0.0, %v1021
        %1023 = vdwg.mxu0
        %1024 = vmatpush.msra.mxu0 0.0
        %1025 = vmatpush.msra.mxu0 0.0
        %1026 = vmatpush.msra.mxu0 0.0
        %1027 = vmatpush.msra.mxu0 0.0
        %1028 = vmatpush.msra.mxu0 0.0
        %1029 = vmatpush.msra.mxu0 0.0
        %1030 = vmatpush.msra.mxu0 0.0
        %1031 = vmatpush.msra.mxu0 0.0
        %1032 = vmatpush.msra.mxu0 0.0
        %1033 = vmatpush.msra.mxu0 0.0
        %1034 = vmatpush.msra.mxu0 0.0
        %1035 = vmatpush.msra.mxu0 0.0
        %1036 = vmatpush.msra.mxu0 0.0
        %1037 = vmatpush.msra.mxu0 0.0
        %1038 = vmatpush.msra.mxu0 %v992
        %1039 = vmatpush.msra.mxu0 %v990
        %1040 = vmatmul.f32.gmra.mxu0 %v996
        %v1041 = vpop.f32.mrf.mxu0
        %v1042 = vadd.f32 0.0, %v1041
        %1043 = vmatmul.f32.gmra.mxu0 %v999
        %v1044 = vpop.f32.mrf.mxu0
        %v1045 = vadd.f32 0.0, %v1044
        %1046 = vdwg.mxu0
        %v1047 = vadd.f32 %v790, %v1019
        %v1048 = vadd.f32 %v791, %v1042
        %v1049 = vadd.f32 %v792, %v1022
        %v1050 = vadd.f32 %v793, %v1045
        %v1051 = vld [vmem:[#allocation5 + $0x30] sm:$0xff]
        %v1052 = vld [vmem:[#allocation5 + $0x38] sm:$0xff]
        %1054 = vset.pattern.permute.xlu0 0
        %1055 = vperm.xlu0 %1054, %v1051
        %v1056 = vpop.permute.xlu0 %1055
        %1059 = vset.pattern.permute.xlu0 0
        %1060 = vperm.xlu0 %1059, %v1052
        %v1061 = vpop.permute.xlu0 %1060
        %v1063 = vadd.f32 %v1047, %v1056
        %v1064 = vadd.f32 %v1048, %v1056
        %v1065 = vadd.f32 %v1049, %v1061
        %v1066 = vadd.f32 %v1050, %v1061
        %v1067 = vmax.f32 %v1063, 0.0
        %v1068 = vmax.f32 %v1064, 0.0
        %v1069 = vmax.f32 %v1065, 0.0
        %v1070 = vmax.f32 %v1066, 0.0
        %1071 = vset.pattern.permute.xlu0 1
        %1072 = vperm.xlu0 %1071, %v1051
        %v1073 = vpop.permute.xlu0 %1072
        %1075 = vset.pattern.permute.xlu0 1
        %1076 = vperm.xlu0 %1075, %v1052
        %v1077 = vpop.permute.xlu0 %1076
        %v1079 = vmul.f32 %v1067, %v1073
        %v1080 = vmul.f32 %v1068, %v1073
        %v1081 = vmul.f32 %v1069, %v1077
        %v1082 = vmul.f32 %v1070, %v1077
        %1083 = vset.pattern.permute.xlu0 2
        %1084 = vperm.xlu0 %1083, %v1051
        %v1085 = vpop.permute.xlu0 %1084
        %1087 = vset.pattern.permute.xlu0 2
        %1088 = vperm.xlu0 %1087, %v1052
        %v1089 = vpop.permute.xlu0 %1088
        %v1091 = vadd.f32 %v1079, %v1085
        %v1092 = vadd.f32 %v1080, %v1085
        %v1093 = vadd.f32 %v1081, %v1089
        %v1094 = vadd.f32 %v1082, %v1089
        %p1095 = scmp.eq.s32.totalorder %s22, 0
        // Predicated region
        $region37: #{tpu_custom_call.1} parent=27 // pred_check
          %p1096 = pneg %p1095
        $region38: #{tpu_custom_call.1} parent=27 // pred_check_branch
          %1098 = sbr.rel (%p1096) target = $region40
        $region39: #{tpu_custom_call.1} parent=27 // pred_region
          %vm1099 = vcmask 7168
          %1100 = vst.msk [vmem:[%s198] sm:$0xff] %vm1099, 0.0
          %1101 = vst.msk [vmem:[%s198 + $0x8] sm:$0xff] %vm1099, 0.0
        $region40: #{tpu_custom_call.1} parent=27 // pred_fallthru
          _
        %v1102 = vld [vmem:[%s198] sm:$0xff]
        %v1103 = vld [vmem:[%s198 + $0x8] sm:$0xff]
        %1108 = vrot.lane.b32.xlu0 %v1091, 122
        %v1109 = vpop.permute.xlu0 %1108
        %1110 = vrot.lane.b32.xlu0 %v1092, 122
        %v1111 = vpop.permute.xlu0 %1110
        %1112 = vrot.lane.b32.xlu0 %v1093, 122
        %v1113 = vpop.permute.xlu0 %1112
        %1114 = vrot.lane.b32.xlu0 %v1094, 122
        %v1115 = vpop.permute.xlu0 %1114
        %vm1116 = vcmask 998400
        %v1117 = vsel %vm1116, %v1109, %v1111
        %v1118 = vsel %vm1116, %v1113, %v1115
        %1121 = vadd.xlane.f32.xlu0 %v1117
        %v1122 = vpop.xlane.xlu0 %1121
        %1123 = vadd.xlane.f32.xlu0 %v1118
        %v1124 = vpop.xlane.xlu0 %1123
        %v1125 = vadd.f32 %v1102, %v1122
        %v1126 = vadd.f32 %v1103, %v1124
        %vm1127 = vcmask 7168
        %1128 = vst.msk [vmem:[%s198] sm:$0xff] %vm1127, %v1125
        %1129 = vst.msk [vmem:[%s198 + $0x8] sm:$0xff] %vm1127, %v1126
        %p1130 = scmp.lt.s32.totalorder %s21, 1
        %s1131 = scalar_select %p1130, %s21, 1
        %s1132 = smul.addr %s1131, 2
        %s1133 = smul.addr %s1132, 8
        %s1134 = scalar_lea.vmem %s2, %s1133
        // Predicated region
        $region41: #{tpu_custom_call.1} parent=27 // pred_check
          %p1135 = pneg %p96
        $region42: #{tpu_custom_call.1} parent=27 // pred_check_branch
          %1137 = sbr.rel (%p1135) target = $region44
        $region43: #{tpu_custom_call.1} parent=27 // pred_region
          _
        $region44: #{tpu_custom_call.1} parent=27 // pred_fallthru
          _
      $region28: #{tpu_custom_call.1} parent=5 // pred_fallthru
        _
      %p1138 = scmp.le.s32.totalorder 2, %s12
      // Predicated region
      $region45: #{tpu_custom_call.1} parent=5 // pred_check
        %p1139 = pneg %p1138
      $region46: #{tpu_custom_call.1} parent=5 // pred_check_branch
        %1141 = sbr.rel (%p1139) target = $region48
      $region47: #{tpu_custom_call.1} parent=5 // pred_region
        %s1142 = ssub.s32 %s12, 2
        // Predicated region
        $region49: #{tpu_custom_call.1} parent=47 // pred_check
          %p1143 = pneg %p102
        $region50: #{tpu_custom_call.1} parent=47 // pred_check_branch
          %1145 = sbr.rel (%p1143) target = $region52
        $region51: #{tpu_custom_call.1} parent=47 // pred_region
          %p1146 = scmp.lt.s32.totalorder %s23, 1
          %s1147 = scalar_select %p1146, %s23, 1
          %s1148 = smul.addr %s1147, 2
          %s1149 = smul.addr %s1148, 8
          %s1150 = scalar_lea.vmem %s2, %s1149
        $region52: #{tpu_custom_call.1} parent=47 // pred_fallthru
          _
      $region48: #{tpu_custom_call.1} parent=5 // pred_fallthru
        _
    $region6: #{tpu_custom_call.1} parent=1 // loop_footer
      %s16 = sadd.s32 1, %s12
    $region7: #{tpu_custom_call.1} parent=1 // loop_footer_branch
      %11 = sbr.rel target = $region3
    $region8: #{tpu_custom_call.1} parent=1 // loop_exit
      _
    %1151 = vsyncpa [#allocation4], 1
    %s1152 = scalar_lea.sflag [#allocation4], 1
    %1153 = vsyncpa %s1152, 1
    %1154 = vsyncpa [#allocation6], 1

</llo_original>
